<compile_context>
chip_gen: v5e
topology: v5e:2x2
jax: 0.10.0
libtpu: 0.0.40
codegen_flags: <defaults>
</compile_context>

<pallas_src>
import functools

import jax
import jax.numpy as jnp
from jax.experimental import pallas as pl
from jax.experimental.pallas import tpu as pltpu

_MXU_DTYPE = jnp.bfloat16   # matmul operand dtype (f32 accumulation on the MXU)
_ACT_DTYPE = jnp.bfloat16   # dtype of the y1 intermediate activation in HBM


# ----------------------------------------------------------------------------
# Banded 3x3 weights (built once in the wrapper, pure JAX)
# ----------------------------------------------------------------------------
def _banded_weights(w_hwio, W):
    """(3, 3, Cin, Cout) -> (3, W*Cin, W*Cout) block-banded slabs, one per dy.

    B[ky, ws*Cin + ci, wd*Cout + co] = w[ky, kx, ci, co]  where ws == wd + kx - 1,
    and 0 otherwise (which also realises the padding=1 zero border along W).
    """
    kh, kw, cin, cout = w_hwio.shape
    ws = jnp.arange(W)[:, None]
    wd = jnp.arange(W)[None, :]
    sel = jnp.stack([(ws == wd + kx - 1) for kx in range(kw)], 0)       # (kw, W, W)
    B = jnp.einsum('xsd,yxio->ysido', sel.astype(w_hwio.dtype), w_hwio)  # (kh,W,Cin,W,Cout)
    return B.reshape(kh, W * cin, W * cout)


# ----------------------------------------------------------------------------
# Kernel
# ----------------------------------------------------------------------------
def _conv_kernel(*refs, nb, H, W, Cin, Cout, fold_in, fold_out, emit_stats, emit_y):
    """One batch block of nb images:

        z   = relu(x * scale_in + shift_in)   if fold_in  else x
        y   = conv3x3(z)              (padding=1, no bias)
        out = relu(y * scale_out + shift_out) if fold_out else y

    with optional per-block partial BN statistics of y (pre-affine).

    Ref layout (all lane-packed: minor dim = W*C, channel fastest):
      x_ref       (nb, H, W*Cin)
      b_ref       (3, W*Cin, W*Cout)      banded weights, one slab per kernel row dy
      sc/sh_in    (1, W*Cin)   [fold_in]
      sc/sh_out   (1, W*Cout)  [fold_out]
      y_ref       (nb, H, W*Cout)  [emit_y]
      sum/sq_ref  (1, 1, W*Cout)   [emit_stats]  per-(w,c) partial sums
      acc_ref     VMEM (nb*H, W*Cout) f32 scratch accumulator
    """
    it = iter(refs)
    x_ref = next(it)
    b_ref = next(it)
    if fold_in:
        sc_in_ref, sh_in_ref = next(it), next(it)
    if fold_out:
        sc_out_ref, sh_out_ref = next(it), next(it)
    y_ref = next(it) if emit_y else None
    if emit_stats:
        sum_ref, sq_ref = next(it), next(it)
    acc_ref = next(it)

    M = nb * H
    WCi = W * Cin
    WCo = W * Cout

    x3 = x_ref[...]                                           # (nb, H, W*Cin)
    if fold_in:
        # Previous stage's BatchNorm + ReLU applied on the load path (f32 VPU math,
        # important on v5e which has no bf16 VALU); that activation never hits HBM.
        x3 = jnp.maximum(x3.astype(jnp.float32) * sc_in_ref[...] + sh_in_ref[...], 0.0)
    xb3 = x3.astype(_MXU_DTYPE)

    # The dy = +/-1 taps must not leak across image boundaries inside the flattened
    # (nb*H) row axis: zero each image's last / first row in the shifted operands.
    row = jax.lax.broadcasted_iota(jnp.int32, (nb, H, 1), 1)
    x_dn3 = jnp.where(row == H - 1, 0.0, xb3)   # row h feeds output row h+1 (kernel row 0)
    x_up3 = jnp.where(row == 0, 0.0, xb3)       # row h feeds output row h-1 (kernel row 2)

    # (nb, H, WC) -> (nb*H, WC) is layout-free for H a multiple of the sublane tile.
    xb = xb3.reshape(M, WCi)
    x_dn = x_dn3.reshape(M, WCi)
    x_up = x_up3.reshape(M, WCi)

    # 3x3 conv as three banded matmuls (bf16 operands, f32 accumulation): the dx
    # taps live inside the banded slabs so K = W*Cin, N = W*Cout are lane-dense and
    # the output is produced directly in the packed layout.  The dy taps are two
    # row-offset accumulations into the lane-dense f32 scratch.
    acc_ref[...] = jnp.dot(xb, b_ref[1], preferred_element_type=jnp.float32)
    acc_ref[pl.ds(1, M - 1), :] = acc_ref[pl.ds(1, M - 1), :] + jnp.dot(
        x_dn[:M - 1, :], b_ref[0], preferred_element_type=jnp.float32)
    acc_ref[pl.ds(0, M - 1), :] = acc_ref[pl.ds(0, M - 1), :] + jnp.dot(
        x_up[1:, :], b_ref[2], preferred_element_type=jnp.float32)
    acc = acc_ref[...]                                        # (M, W*Cout) f32

    if emit_stats:
        # Per-(w, c) lane partial sums in f32.  The tiny W-fold + cross-block
        # reduction happens in the wrapper, so the kernel stays lane-dense (no
        # lane->sublane relayout here) and the grid axis can be "parallel".
        sum_ref[0] = jnp.sum(acc, axis=0, keepdims=True)
        sq_ref[0] = jnp.sum(acc * acc, axis=0, keepdims=True)

    if emit_y:
        out = acc
        if fold_out:
            out = jnp.maximum(out * sc_out_ref[...] + sh_out_ref[...], 0.0)
        y_ref[...] = out.reshape(nb, H, WCo).astype(y_ref.dtype)   # full-width vst


# ----------------------------------------------------------------------------
# pallas_call wrapper for one conv stage
# ----------------------------------------------------------------------------
def conv_stage(x, banded_w, scale_in, shift_in, scale_out, shift_out, *,
               H, W, Cin, Cout, nb, fold_in, fold_out, emit_stats, emit_y,
               y_dtype=jnp.float32):
    N = x.shape[0]
    G = N // nb
    WCi, WCo = W * Cin, W * Cout

    inputs = [x, banded_w]
    in_specs = [pl.BlockSpec((nb, H, WCi), lambda g: (g, 0, 0)),
                pl.BlockSpec((3, WCi, WCo), lambda g: (0, 0, 0))]
    if fold_in:
        inputs += [scale_in, shift_in]
        in_specs += [pl.BlockSpec((1, WCi), lambda g: (0, 0))] * 2
    if fold_out:
        inputs += [scale_out, shift_out]
        in_specs += [pl.BlockSpec((1, WCo), lambda g: (0, 0))] * 2

    out_shape, out_specs = [], []
    if emit_y:
        out_shape.append(jax.ShapeDtypeStruct((N, H, WCo), y_dtype))
        out_specs.append(pl.BlockSpec((nb, H, WCo), lambda g: (g, 0, 0)))
    if emit_stats:
        out_shape += [jax.ShapeDtypeStruct((G, 1, WCo), jnp.float32)] * 2
        out_specs += [pl.BlockSpec((1, 1, WCo), lambda g: (g, 0, 0))] * 2

    kern = functools.partial(_conv_kernel, nb=nb, H=H, W=W, Cin=Cin, Cout=Cout,
                             fold_in=fold_in, fold_out=fold_out,
                             emit_stats=emit_stats, emit_y=emit_y)
    return pl.pallas_call(
        kern,
        out_shape=tuple(out_shape),
        grid=(G,),
        in_specs=in_specs,
        out_specs=tuple(out_specs),
        scratch_shapes=[pltpu.VMEM((nb * H, WCo), jnp.float32)],
        # Per-block partial stats -> no revisited output blocks -> the batch-block
        # axis is safely "parallel" (shards across both TensorCores on v7x).
        compiler_params=pltpu.CompilerParams(dimension_semantics=("parallel",)),
    )(*inputs)


# ----------------------------------------------------------------------------
# BatchNorm folding helpers (wrapper-side, tiny)
# ----------------------------------------------------------------------------
def _fold_bn(psum, psq, gamma, beta, count, eps, W, C):
    """Partial per-(w,c) sums -> per-channel training-mode BN scale / shift."""
    s = psum.sum(axis=(0, 1)).reshape(W, C).sum(axis=0)
    q = psq.sum(axis=(0, 1)).reshape(W, C).sum(axis=0)
    mean = s / count
    # NOTE: E[y^2] - mean^2 in f32 (clamped at 0) is cancellation-prone for very
    # large / offset activations; TODO(synk): shifted/Welford reduction at scale.
    var = jnp.maximum(q / count - mean * mean, 0.0)
    scale = gamma * jax.lax.rsqrt(var + eps)
    shift = beta - mean * scale
    return scale, shift


def _tile_channels(v, W):
    """Per-channel (C,) -> (1, W*C) matching the packed lane order w*C + c."""
    return jnp.tile(v, W).reshape(1, W * v.shape[0]).astype(jnp.float32)


# ----------------------------------------------------------------------------
# Full DoubleConvolution forward
# ----------------------------------------------------------------------------
def double_convolution(x_nchw, params, eps=1e-5, batch_block=8):
    N, Cin, H, W = x_nchw.shape
    Cout = params["w1"].shape[-1]
    assert H % 8 == 0, "packed layout assumes H is sublane-tile aligned"
    # TODO(synk): pad H / add row-strip tiling for shapes that violate this.

    nb = min(N, batch_block)
    while N % nb:
        nb -= 1
    count = float(N * H * W)

    # Layout plumbing at the boundary only: NCHW -> lane-packed (N, H, W*C), bf16.
    xp = jnp.transpose(x_nchw, (0, 2, 3, 1)).reshape(N, H, W * Cin).astype(_MXU_DTYPE)
    B1 = _banded_weights(params["w1"], W).astype(_MXU_DTYPE)    # (3, W*Cin,  W*Cout)
    B2 = _banded_weights(params["w2"], W).astype(_MXU_DTYPE)    # (3, W*Cout, W*Cout)

    # Stage 1: conv1 -> y1 (bf16) + partial stats of y1.
    #          (conv bias dropped: exactly cancelled by training-mode BN mean.)
    y1, s1, q1 = conv_stage(xp, B1, None, None, None, None,
                            H=H, W=W, Cin=Cin, Cout=Cout, nb=nb,
                            fold_in=False, fold_out=False,
                            emit_stats=True, emit_y=True, y_dtype=_ACT_DTYPE)
    sc1, sh1 = _fold_bn(s1, q1, params["gamma1"], params["beta1"], count, eps, W, Cout)
    sc1_t, sh1_t = _tile_channels(sc1, W), _tile_channels(sh1, W)

    # Stage 2: BN1+ReLU folded into conv2's load path, stats of y2 only
    #          (y2 never touches HBM).
    s2, q2 = conv_stage(y1, B2, sc1_t, sh1_t, None, None,
                        H=H, W=W, Cin=Cout, Cout=Cout, nb=nb,
                        fold_in=True, fold_out=False,
                        emit_stats=True, emit_y=False)
    sc2, sh2 = _fold_bn(s2, q2, params["gamma2"], params["beta2"], count, eps, W, Cout)
    sc2_t, sh2_t = _tile_channels(sc2, W), _tile_channels(sh2, W)

    # Stage 3: recompute conv2 from bf16 y1 (BN1+ReLU folded on load) with BN2+ReLU
    # folded on the store path.  Recomputing the (<1%-occupied) MXU work is cheaper
    # than the old elementwise pass's extra HBM write+read of y2.
    # TODO(synk): in a full UNet, fold BN2+ReLU (+maxpool) into the next block's
    # load path instead and skip this call entirely.
    z = conv_stage(y1, B2, sc1_t, sh1_t, sc2_t, sh2_t,
                   H=H, W=W, Cin=Cout, Cout=Cout, nb=nb,
                   fold_in=True, fold_out=True,
                   emit_stats=False, emit_y=True, y_dtype=jnp.float32)[0]

    return jnp.transpose(z.reshape(N, H, W, Cout), (0, 3, 1, 2))   # -> NCHW


# ----------------------------------------------------------------------------
# Deterministic parameter init (mirrors nn.Conv2d / nn.BatchNorm2d defaults)
# ----------------------------------------------------------------------------
def init_params(key, cin, cout):
    k1, k2, k3, k4 = jax.random.split(key, 4)
    bound1 = 1.0 / jnp.sqrt(cin * 9.0)
    bound2 = 1.0 / jnp.sqrt(cout * 9.0)
    w1_oihw = jax.random.uniform(k1, (cout, cin, 3, 3), jnp.float32, -bound1, bound1)
    b1 = jax.random.uniform(k2, (cout,), jnp.float32, -bound1, bound1)
    w2_oihw = jax.random.uniform(k3, (cout, cout, 3, 3), jnp.float32, -bound2, bound2)
    b2 = jax.random.uniform(k4, (cout,), jnp.float32, -bound2, bound2)
    return {
        "w1_oihw": w1_oihw, "w2_oihw": w2_oihw,
        "b1": b1, "b2": b2,                              # used only by the reference
        "w1": jnp.transpose(w1_oihw, (2, 3, 1, 0)),      # (3, 3, Cin, Cout)
        "w2": jnp.transpose(w2_oihw, (2, 3, 1, 0)),
        "gamma1": jnp.ones((cout,), jnp.float32), "beta1": jnp.zeros((cout,), jnp.float32),
        "gamma2": jnp.ones((cout,), jnp.float32), "beta2": jnp.zeros((cout,), jnp.float32),
    }


# ----------------------------------------------------------------------------
# Pure-JAX f32 reference (NCHW, matches the PyTorch module in training mode,
# including the conv biases - they are cancelled exactly by the BN mean).
# ----------------------------------------------------------------------------
def reference(x_nchw, params, eps=1e-5):
    dn = ("NCHW", "OIHW", "NCHW")

    def conv(x, w, b):
        y = jax.lax.conv_general_dilated(x, w, (1, 1), ((1, 1), (1, 1)),
                                         dimension_numbers=dn)
        return y + b[None, :, None, None]

    def bnr(y, g, bta):
        mean = jnp.mean(y, axis=(0, 2, 3), keepdims=True)
        var = jnp.var(y, axis=(0, 2, 3), keepdims=True)
        yn = (y - mean) / jnp.sqrt(var + eps)
        return jnp.maximum(yn * g[None, :, None, None] + bta[None, :, None, None], 0.0)

    y1 = bnr(conv(x_nchw, params["w1_oihw"], params["b1"]),
             params["gamma1"], params["beta1"])
    y2 = bnr(conv(y1, params["w2_oihw"], params["b2"]),
             params["gamma2"], params["beta2"])
    return y2


if __name__ == "__main__":
    key = jax.random.PRNGKey(0)
    kx, kp = jax.random.split(key)
    N, Cin, H, W = 2, 4, 16, 16
    Cout = 8

    x = jax.random.normal(kx, (N, Cin, H, W), jnp.float32)
    params = init_params(kp, Cin, Cout)

    out = jax.block_until_ready(jax.jit(double_convolution)(x, params))
    assert out.shape == (N, Cout, H, W), out.shape

    ref = reference(x, params)
    err = float(jnp.max(jnp.abs(out - ref)))
    # bf16 MXU operands + bf16 y1 intermediate => ~1% error vs the f32 reference.
    assert jnp.allclose(out, ref, rtol=2e-2, atol=2e-2), err

    print("KERNEL_OK")
</pallas_src>

<mosaic_0001>
module attributes {stable_mosaic.version = 11 : i64} {
  func.func @_conv_kernel(%arg0: i32, %arg1: memref<2x16x64xbf16, #tpu.memory_space<vmem>>, %arg2: memref<3x64x128xbf16, #tpu.memory_space<vmem>>, %arg3: memref<2x16x128xbf16, #tpu.memory_space<vmem>>, %arg4: memref<1x1x128xf32, #tpu.memory_space<vmem>>, %arg5: memref<1x1x128xf32, #tpu.memory_space<vmem>>, %arg6: memref<32x128xf32, #tpu.memory_space<vmem>>) attributes {dimension_semantics = [#tpu.dimension_semantics<parallel>], iteration_bounds = array<i64: 1>, scalar_prefetch = 0 : i64, scratch_operands = 1 : i64, tpu.core_type = #tpu.core_type<tc>, window_params = [{transform_indices = @transform_0, window_bounds = array<i64: 2, 16, 64>}, {pipeline_mode = #tpu.pipeline_mode<synchronous>, transform_indices = @transform_1, window_bounds = array<i64: 3, 64, 128>}, {transform_indices = @transform_2, window_bounds = array<i64: 2, 16, 128>}, {transform_indices = @transform_3, window_bounds = array<i64: 1, 1, 128>}, {transform_indices = @transform_4, window_bounds = array<i64: 1, 1, 128>}]} {
    %c0 = arith.constant 0 : index
    %c0_0 = arith.constant 0 : index
    %c0_1 = arith.constant 0 : index
    %0 = vector.load %arg1[%c0, %c0_0, %c0_1] : memref<2x16x64xbf16, #tpu.memory_space<vmem>>, vector<2x16x64xbf16>
    %1 = tpu.iota {dimensions = array<i32: 1>} : vector<2x16x1xi32>
    %c15_i32 = arith.constant 15 : i32
    %2 = vector.broadcast %c15_i32 : i32 to vector<2x16x1xi32>
    %3 = arith.cmpi eq, %1, %2 : vector<2x16x1xi32>
    %cst = arith.constant 0.000000e+00 : f32
    %4 = arith.truncf %cst : f32 to bf16
    %5 = vector.shape_cast %3 : vector<2x16x1xi1> to vector<2x16x1xi1>
    %6 = vector.broadcast %5 : vector<2x16x1xi1> to vector<2x16x64xi1>
    %7 = vector.broadcast %4 : bf16 to vector<2x16x64xbf16>
    %8 = arith.select %6, %7, %0 : vector<2x16x64xi1>, vector<2x16x64xbf16>
    %c0_i32 = arith.constant 0 : i32
    %9 = vector.broadcast %c0_i32 : i32 to vector<2x16x1xi32>
    %10 = arith.cmpi eq, %1, %9 : vector<2x16x1xi32>
    %cst_2 = arith.constant 0.000000e+00 : f32
    %11 = arith.truncf %cst_2 : f32 to bf16
    %12 = vector.shape_cast %10 : vector<2x16x1xi1> to vector<2x16x1xi1>
    %13 = vector.broadcast %12 : vector<2x16x1xi1> to vector<2x16x64xi1>
    %14 = vector.broadcast %11 : bf16 to vector<2x16x64xbf16>
    %15 = arith.select %13, %14, %0 : vector<2x16x64xi1>, vector<2x16x64xbf16>
    %16 = vector.shape_cast %0 : vector<2x16x64xbf16> to vector<32x64xbf16>
    %17 = vector.shape_cast %8 : vector<2x16x64xbf16> to vector<32x64xbf16>
    %18 = vector.shape_cast %15 : vector<2x16x64xbf16> to vector<32x64xbf16>
    %c1 = arith.constant 1 : index
    %c0_3 = arith.constant 0 : index
    %c0_4 = arith.constant 0 : index
    %19 = vector.load %arg2[%c1, %c0_3, %c0_4] : memref<3x64x128xbf16, #tpu.memory_space<vmem>>, vector<1x64x128xbf16>
    %20 = vector.shape_cast %19 : vector<1x64x128xbf16> to vector<64x128xbf16>
    %cst_5 = arith.constant dense<0.000000e+00> : vector<32x128xf32>
    %21 = tpu.matmul %16, %20, %cst_5 {dimension_numbers = #tpu.dot_dimension_numbers<[1], [0], [0], [1], [0, 0, 1, 1], [], []>} : vector<32x64xbf16>, vector<64x128xbf16>, vector<32x128xf32> -> vector<32x128xf32>
    %c0_6 = arith.constant 0 : index
    %c0_7 = arith.constant 0 : index
    %22 = vector.load %arg6[%c0_6, %c0_7] : memref<32x128xf32, #tpu.memory_space<vmem>>, vector<32x128xf32>
    tpu.vector_store %arg6[%c0_6, %c0_7], %21 {strides = array<i32>} : memref<32x128xf32, #tpu.memory_space<vmem>>, vector<32x128xf32>,
    %c1_8 = arith.constant 1 : index
    %c0_9 = arith.constant 0 : index
    %23 = vector.load %arg6[%c1_8, %c0_9] : memref<32x128xf32, #tpu.memory_space<vmem>>, vector<31x128xf32>
    %24 = vector.extract_strided_slice %17 {offsets = [0, 0], sizes = [31, 64], strides = [1, 1]} : vector<32x64xbf16> to vector<31x64xbf16>
    %c0_10 = arith.constant 0 : index
    %c0_11 = arith.constant 0 : index
    %c0_12 = arith.constant 0 : index
    %25 = vector.load %arg2[%c0_10, %c0_11, %c0_12] : memref<3x64x128xbf16, #tpu.memory_space<vmem>>, vector<1x64x128xbf16>
    %26 = vector.shape_cast %25 : vector<1x64x128xbf16> to vector<64x128xbf16>
    %cst_13 = arith.constant dense<0.000000e+00> : vector<31x128xf32>
    %27 = tpu.matmul %24, %26, %cst_13 {dimension_numbers = #tpu.dot_dimension_numbers<[1], [0], [0], [1], [0, 0, 1, 1], [], []>} : vector<31x64xbf16>, vector<64x128xbf16>, vector<31x128xf32> -> vector<31x128xf32>
    %28 = arith.addf %23, %27 : vector<31x128xf32>
    %c1_14 = arith.constant 1 : index
    %c0_15 = arith.constant 0 : index
    %29 = vector.load %arg6[%c1_14, %c0_15] : memref<32x128xf32, #tpu.memory_space<vmem>>, vector<31x128xf32>
    tpu.vector_store %arg6[%c1_14, %c0_15], %28 {strides = array<i32>} : memref<32x128xf32, #tpu.memory_space<vmem>>, vector<31x128xf32>,
    %c0_16 = arith.constant 0 : index
    %c0_17 = arith.constant 0 : index
    %30 = vector.load %arg6[%c0_16, %c0_17] : memref<32x128xf32, #tpu.memory_space<vmem>>, vector<31x128xf32>
    %31 = vector.extract_strided_slice %18 {offsets = [1, 0], sizes = [31, 64], strides = [1, 1]} : vector<32x64xbf16> to vector<31x64xbf16>
    %c2 = arith.constant 2 : index
    %c0_18 = arith.constant 0 : index
    %c0_19 = arith.constant 0 : index
    %32 = vector.load %arg2[%c2, %c0_18, %c0_19] : memref<3x64x128xbf16, #tpu.memory_space<vmem>>, vector<1x64x128xbf16>
    %33 = vector.shape_cast %32 : vector<1x64x128xbf16> to vector<64x128xbf16>
    %cst_20 = arith.constant dense<0.000000e+00> : vector<31x128xf32>
    %34 = tpu.matmul %31, %33, %cst_20 {dimension_numbers = #tpu.dot_dimension_numbers<[1], [0], [0], [1], [0, 0, 1, 1], [], []>} : vector<31x64xbf16>, vector<64x128xbf16>, vector<31x128xf32> -> vector<31x128xf32>
    %35 = arith.addf %30, %34 : vector<31x128xf32>
    %c0_21 = arith.constant 0 : index
    %c0_22 = arith.constant 0 : index
    %36 = vector.load %arg6[%c0_21, %c0_22] : memref<32x128xf32, #tpu.memory_space<vmem>>, vector<31x128xf32>
    tpu.vector_store %arg6[%c0_21, %c0_22], %35 {strides = array<i32>} : memref<32x128xf32, #tpu.memory_space<vmem>>, vector<31x128xf32>,
    %c0_23 = arith.constant 0 : index
    %c0_24 = arith.constant 0 : index
    %37 = vector.load %arg6[%c0_23, %c0_24] : memref<32x128xf32, #tpu.memory_space<vmem>>, vector<32x128xf32>
    %cst_25 = arith.constant dense<0.000000e+00> : vector<128xf32>
    %38 = vector.multi_reduction <add>, %37, %cst_25 [0] : vector<32x128xf32> to vector<128xf32>
    %39 = vector.shape_cast %38 : vector<128xf32> to vector<1x128xf32>
    %c0_26 = arith.constant 0 : index
    %c0_27 = arith.constant 0 : index
    %c0_28 = arith.constant 0 : index
    %40 = vector.load %arg4[%c0_26, %c0_27, %c0_28] : memref<1x1x128xf32, #tpu.memory_space<vmem>>, vector<1x1x128xf32>
    %41 = vector.shape_cast %40 : vector<1x1x128xf32> to vector<1x128xf32>
    %42 = vector.shape_cast %39 : vector<1x128xf32> to vector<1x1x128xf32>
    tpu.vector_store %arg4[%c0_26, %c0_27, %c0_28], %42 {strides = array<i32>} : memref<1x1x128xf32, #tpu.memory_space<vmem>>, vector<1x1x128xf32>,
    %43 = arith.mulf %37, %37 : vector<32x128xf32>
    %cst_29 = arith.constant dense<0.000000e+00> : vector<128xf32>
    %44 = vector.multi_reduction <add>, %43, %cst_29 [0] : vector<32x128xf32> to vector<128xf32>
    %45 = vector.shape_cast %44 : vector<128xf32> to vector<1x128xf32>
    %c0_30 = arith.constant 0 : index
    %c0_31 = arith.constant 0 : index
    %c0_32 = arith.constant 0 : index
    %46 = vector.load %arg5[%c0_30, %c0_31, %c0_32] : memref<1x1x128xf32, #tpu.memory_space<vmem>>, vector<1x1x128xf32>
    %47 = vector.shape_cast %46 : vector<1x1x128xf32> to vector<1x128xf32>
    %48 = vector.shape_cast %45 : vector<1x128xf32> to vector<1x1x128xf32>
    tpu.vector_store %arg5[%c0_30, %c0_31, %c0_32], %48 {strides = array<i32>} : memref<1x1x128xf32, #tpu.memory_space<vmem>>, vector<1x1x128xf32>,
    %49 = vector.shape_cast %37 : vector<32x128xf32> to vector<2x16x128xf32>
    %50 = arith.truncf %49 : vector<2x16x128xf32> to vector<2x16x128xbf16>
    %c0_33 = arith.constant 0 : index
    %c0_34 = arith.constant 0 : index
    %c0_35 = arith.constant 0 : index
    %51 = vector.load %arg3[%c0_33, %c0_34, %c0_35] : memref<2x16x128xbf16, #tpu.memory_space<vmem>>, vector<2x16x128xbf16>
    tpu.vector_store %arg3[%c0_33, %c0_34, %c0_35], %50 {strides = array<i32>} : memref<2x16x128xbf16, #tpu.memory_space<vmem>>, vector<2x16x128xbf16>,
    return
  }
  func.func @transform_0(%arg0: i32) -> (i32, i32, i32) {
    %c0_i32 = arith.constant 0 : i32
    %c0_i32_0 = arith.constant 0 : i32
    %c0_i32_1 = arith.constant 0 : i32
    return %arg0, %c0_i32, %c0_i32_0 : i32, i32, i32
  }
  func.func @transform_1(%arg0: i32) -> (i32, i32, i32) {
    %c0_i32 = arith.constant 0 : i32
    %c0_i32_0 = arith.constant 0 : i32
    %c0_i32_1 = arith.constant 0 : i32
    %c0_i32_2 = arith.constant 0 : i32
    return %c0_i32, %c0_i32_0, %c0_i32_1 : i32, i32, i32
  }
  func.func @transform_2(%arg0: i32) -> (i32, i32, i32) {
    %c0_i32 = arith.constant 0 : i32
    %c0_i32_0 = arith.constant 0 : i32
    %c0_i32_1 = arith.constant 0 : i32
    return %arg0, %c0_i32, %c0_i32_0 : i32, i32, i32
  }
  func.func @transform_3(%arg0: i32) -> (i32, i32, i32) {
    %c0_i32 = arith.constant 0 : i32
    %c0_i32_0 = arith.constant 0 : i32
    %c0_i32_1 = arith.constant 0 : i32
    return %arg0, %c0_i32, %c0_i32_0 : i32, i32, i32
  }
  func.func @transform_4(%arg0: i32) -> (i32, i32, i32) {
    %c0_i32 = arith.constant 0 : i32
    %c0_i32_0 = arith.constant 0 : i32
    %c0_i32_1 = arith.constant 0 : i32
    return %arg0, %c0_i32, %c0_i32_0 : i32, i32, i32
  }
}

module attributes {stable_mosaic.version = 11 : i64} {
  func.func @_conv_kernel(%arg0: i32, %arg1: memref<2x16x128xbf16, #tpu.memory_space<vmem>>, %arg2: memref<3x128x128xbf16, #tpu.memory_space<vmem>>, %arg3: memref<1x128xf32, #tpu.memory_space<vmem>>, %arg4: memref<1x128xf32, #tpu.memory_space<vmem>>, %arg5: memref<1x1x128xf32, #tpu.memory_space<vmem>>, %arg6: memref<1x1x128xf32, #tpu.memory_space<vmem>>, %arg7: memref<32x128xf32, #tpu.memory_space<vmem>>) attributes {dimension_semantics = [#tpu.dimension_semantics<parallel>], iteration_bounds = array<i64: 1>, scalar_prefetch = 0 : i64, scratch_operands = 1 : i64, tpu.core_type = #tpu.core_type<tc>, window_params = [{transform_indices = @transform_0, window_bounds = array<i64: 2, 16, 128>}, {pipeline_mode = #tpu.pipeline_mode<synchronous>, transform_indices = @transform_1, window_bounds = array<i64: 3, 128, 128>}, {pipeline_mode = #tpu.pipeline_mode<synchronous>, transform_indices = @transform_2, window_bounds = array<i64: 1, 128>}, {pipeline_mode = #tpu.pipeline_mode<synchronous>, transform_indices = @transform_3, window_bounds = array<i64: 1, 128>}, {transform_indices = @transform_4, window_bounds = array<i64: 1, 1, 128>}, {transform_indices = @transform_5, window_bounds = array<i64: 1, 1, 128>}]} {
    %c0 = arith.constant 0 : index
    %c0_0 = arith.constant 0 : index
    %c0_1 = arith.constant 0 : index
    %0 = vector.load %arg1[%c0, %c0_0, %c0_1] : memref<2x16x128xbf16, #tpu.memory_space<vmem>>, vector<2x16x128xbf16>
    %1 = arith.extf %0 : vector<2x16x128xbf16> to vector<2x16x128xf32>
    %c0_2 = arith.constant 0 : index
    %c0_3 = arith.constant 0 : index
    %2 = vector.load %arg3[%c0_2, %c0_3] : memref<1x128xf32, #tpu.memory_space<vmem>>, vector<1x128xf32>
    %3 = vector.shape_cast %2 : vector<1x128xf32> to vector<1x1x128xf32>
    %4 = vector.broadcast %3 : vector<1x1x128xf32> to vector<2x16x128xf32>
    %5 = arith.mulf %1, %4 : vector<2x16x128xf32>
    %c0_4 = arith.constant 0 : index
    %c0_5 = arith.constant 0 : index
    %6 = vector.load %arg4[%c0_4, %c0_5] : memref<1x128xf32, #tpu.memory_space<vmem>>, vector<1x128xf32>
    %7 = vector.shape_cast %6 : vector<1x128xf32> to vector<1x1x128xf32>
    %8 = vector.broadcast %7 : vector<1x1x128xf32> to vector<2x16x128xf32>
    %9 = arith.addf %5, %8 : vector<2x16x128xf32>
    %cst = arith.constant 0.000000e+00 : f32
    %10 = vector.broadcast %cst : f32 to vector<2x16x128xf32>
    %11 = arith.maximumf %9, %10 : vector<2x16x128xf32>
    %12 = arith.truncf %11 : vector<2x16x128xf32> to vector<2x16x128xbf16>
    %13 = tpu.iota {dimensions = array<i32: 1>} : vector<2x16x1xi32>
    %c15_i32 = arith.constant 15 : i32
    %14 = vector.broadcast %c15_i32 : i32 to vector<2x16x1xi32>
    %15 = arith.cmpi eq, %13, %14 : vector<2x16x1xi32>
    %cst_6 = arith.constant 0.000000e+00 : f32
    %16 = arith.truncf %cst_6 : f32 to bf16
    %17 = vector.shape_cast %15 : vector<2x16x1xi1> to vector<2x16x1xi1>
    %18 = vector.broadcast %17 : vector<2x16x1xi1> to vector<2x16x128xi1>
    %19 = vector.broadcast %16 : bf16 to vector<2x16x128xbf16>
    %20 = arith.select %18, %19, %12 : vector<2x16x128xi1>, vector<2x16x128xbf16>
    %c0_i32 = arith.constant 0 : i32
    %21 = vector.broadcast %c0_i32 : i32 to vector<2x16x1xi32>
    %22 = arith.cmpi eq, %13, %21 : vector<2x16x1xi32>
    %cst_7 = arith.constant 0.000000e+00 : f32
    %23 = arith.truncf %cst_7 : f32 to bf16
    %24 = vector.shape_cast %22 : vector<2x16x1xi1> to vector<2x16x1xi1>
    %25 = vector.broadcast %24 : vector<2x16x1xi1> to vector<2x16x128xi1>
    %26 = vector.broadcast %23 : bf16 to vector<2x16x128xbf16>
    %27 = arith.select %25, %26, %12 : vector<2x16x128xi1>, vector<2x16x128xbf16>
    %28 = vector.shape_cast %12 : vector<2x16x128xbf16> to vector<32x128xbf16>
    %29 = vector.shape_cast %20 : vector<2x16x128xbf16> to vector<32x128xbf16>
    %30 = vector.shape_cast %27 : vector<2x16x128xbf16> to vector<32x128xbf16>
    %c1 = arith.constant 1 : index
    %c0_8 = arith.constant 0 : index
    %c0_9 = arith.constant 0 : index
    %31 = vector.load %arg2[%c1, %c0_8, %c0_9] : memref<3x128x128xbf16, #tpu.memory_space<vmem>>, vector<1x128x128xbf16>
    %32 = vector.shape_cast %31 : vector<1x128x128xbf16> to vector<128x128xbf16>
    %cst_10 = arith.constant dense<0.000000e+00> : vector<32x128xf32>
    %33 = tpu.matmul %28, %32, %cst_10 {dimension_numbers = #tpu.dot_dimension_numbers<[1], [0], [0], [1], [0, 0, 1, 1], [], []>} : vector<32x128xbf16>, vector<128x128xbf16>, vector<32x128xf32> -> vector<32x128xf32>
    %c0_11 = arith.constant 0 : index
    %c0_12 = arith.constant 0 : index
    %34 = vector.load %arg7[%c0_11, %c0_12] : memref<32x128xf32, #tpu.memory_space<vmem>>, vector<32x128xf32>
    tpu.vector_store %arg7[%c0_11, %c0_12], %33 {strides = array<i32>} : memref<32x128xf32, #tpu.memory_space<vmem>>, vector<32x128xf32>,
    %c1_13 = arith.constant 1 : index
    %c0_14 = arith.constant 0 : index
    %35 = vector.load %arg7[%c1_13, %c0_14] : memref<32x128xf32, #tpu.memory_space<vmem>>, vector<31x128xf32>
    %36 = vector.extract_strided_slice %29 {offsets = [0, 0], sizes = [31, 128], strides = [1, 1]} : vector<32x128xbf16> to vector<31x128xbf16>
    %c0_15 = arith.constant 0 : index
    %c0_16 = arith.constant 0 : index
    %c0_17 = arith.constant 0 : index
    %37 = vector.load %arg2[%c0_15, %c0_16, %c0_17] : memref<3x128x128xbf16, #tpu.memory_space<vmem>>, vector<1x128x128xbf16>
    %38 = vector.shape_cast %37 : vector<1x128x128xbf16> to vector<128x128xbf16>
    %cst_18 = arith.constant dense<0.000000e+00> : vector<31x128xf32>
    %39 = tpu.matmul %36, %38, %cst_18 {dimension_numbers = #tpu.dot_dimension_numbers<[1], [0], [0], [1], [0, 0, 1, 1], [], []>} : vector<31x128xbf16>, vector<128x128xbf16>, vector<31x128xf32> -> vector<31x128xf32>
    %40 = arith.addf %35, %39 : vector<31x128xf32>
    %c1_19 = arith.constant 1 : index
    %c0_20 = arith.constant 0 : index
    %41 = vector.load %arg7[%c1_19, %c0_20] : memref<32x128xf32, #tpu.memory_space<vmem>>, vector<31x128xf32>
    tpu.vector_store %arg7[%c1_19, %c0_20], %40 {strides = array<i32>} : memref<32x128xf32, #tpu.memory_space<vmem>>, vector<31x128xf32>,
    %c0_21 = arith.constant 0 : index
    %c0_22 = arith.constant 0 : index
    %42 = vector.load %arg7[%c0_21, %c0_22] : memref<32x128xf32, #tpu.memory_space<vmem>>, vector<31x128xf32>
    %43 = vector.extract_strided_slice %30 {offsets = [1, 0], sizes = [31, 128], strides = [1, 1]} : vector<32x128xbf16> to vector<31x128xbf16>
    %c2 = arith.constant 2 : index
    %c0_23 = arith.constant 0 : index
    %c0_24 = arith.constant 0 : index
    %44 = vector.load %arg2[%c2, %c0_23, %c0_24] : memref<3x128x128xbf16, #tpu.memory_space<vmem>>, vector<1x128x128xbf16>
    %45 = vector.shape_cast %44 : vector<1x128x128xbf16> to vector<128x128xbf16>
    %cst_25 = arith.constant dense<0.000000e+00> : vector<31x128xf32>
    %46 = tpu.matmul %43, %45, %cst_25 {dimension_numbers = #tpu.dot_dimension_numbers<[1], [0], [0], [1], [0, 0, 1, 1], [], []>} : vector<31x128xbf16>, vector<128x128xbf16>, vector<31x128xf32> -> vector<31x128xf32>
    %47 = arith.addf %42, %46 : vector<31x128xf32>
    %c0_26 = arith.constant 0 : index
    %c0_27 = arith.constant 0 : index
    %48 = vector.load %arg7[%c0_26, %c0_27] : memref<32x128xf32, #tpu.memory_space<vmem>>, vector<31x128xf32>
    tpu.vector_store %arg7[%c0_26, %c0_27], %47 {strides = array<i32>} : memref<32x128xf32, #tpu.memory_space<vmem>>, vector<31x128xf32>,
    %c0_28 = arith.constant 0 : index
    %c0_29 = arith.constant 0 : index
    %49 = vector.load %arg7[%c0_28, %c0_29] : memref<32x128xf32, #tpu.memory_space<vmem>>, vector<32x128xf32>
    %cst_30 = arith.constant dense<0.000000e+00> : vector<128xf32>
    %50 = vector.multi_reduction <add>, %49, %cst_30 [0] : vector<32x128xf32> to vector<128xf32>
    %51 = vector.shape_cast %50 : vector<128xf32> to vector<1x128xf32>
    %c0_31 = arith.constant 0 : index
    %c0_32 = arith.constant 0 : index
    %c0_33 = arith.constant 0 : index
    %52 = vector.load %arg5[%c0_31, %c0_32, %c0_33] : memref<1x1x128xf32, #tpu.memory_space<vmem>>, vector<1x1x128xf32>
    %53 = vector.shape_cast %52 : vector<1x1x128xf32> to vector<1x128xf32>
    %54 = vector.shape_cast %51 : vector<1x128xf32> to vector<1x1x128xf32>
    tpu.vector_store %arg5[%c0_31, %c0_32, %c0_33], %54 {strides = array<i32>} : memref<1x1x128xf32, #tpu.memory_space<vmem>>, vector<1x1x128xf32>,
    %55 = arith.mulf %49, %49 : vector<32x128xf32>
    %cst_34 = arith.constant dense<0.000000e+00> : vector<128xf32>
    %56 = vector.multi_reduction <add>, %55, %cst_34 [0] : vector<32x128xf32> to vector<128xf32>
    %57 = vector.shape_cast %56 : vector<128xf32> to vector<1x128xf32>
    %c0_35 = arith.constant 0 : index
    %c0_36 = arith.constant 0 : index
    %c0_37 = arith.constant 0 : index
    %58 = vector.load %arg6[%c0_35, %c0_36, %c0_37] : memref<1x1x128xf32, #tpu.memory_space<vmem>>, vector<1x1x128xf32>
    %59 = vector.shape_cast %58 : vector<1x1x128xf32> to vector<1x128xf32>
    %60 = vector.shape_cast %57 : vector<1x128xf32> to vector<1x1x128xf32>
    tpu.vector_store %arg6[%c0_35, %c0_36, %c0_37], %60 {strides = array<i32>} : memref<1x1x128xf32, #tpu.memory_space<vmem>>, vector<1x1x128xf32>,
    return
  }
  func.func @transform_0(%arg0: i32) -> (i32, i32, i32) {
    %c0_i32 = arith.constant 0 : i32
    %c0_i32_0 = arith.constant 0 : i32
    %c0_i32_1 = arith.constant 0 : i32
    return %arg0, %c0_i32, %c0_i32_0 : i32, i32, i32
  }
  func.func @transform_1(%arg0: i32) -> (i32, i32, i32) {
    %c0_i32 = arith.constant 0 : i32
    %c0_i32_0 = arith.constant 0 : i32
    %c0_i32_1 = arith.constant 0 : i32
    %c0_i32_2 = arith.constant 0 : i32
    return %c0_i32, %c0_i32_0, %c0_i32_1 : i32, i32, i32
  }
  func.func @transform_2(%arg0: i32) -> (i32, i32) {
    %c0_i32 = arith.constant 0 : i32
    %c0_i32_0 = arith.constant 0 : i32
    %c0_i32_1 = arith.constant 0 : i32
    return %c0_i32, %c0_i32_0 : i32, i32
  }
  func.func @transform_3(%arg0: i32) -> (i32, i32) {
    %c0_i32 = arith.constant 0 : i32
    %c0_i32_0 = arith.constant 0 : i32
    %c0_i32_1 = arith.constant 0 : i32
    return %c0_i32, %c0_i32_0 : i32, i32
  }
  func.func @transform_4(%arg0: i32) -> (i32, i32, i32) {
    %c0_i32 = arith.constant 0 : i32
    %c0_i32_0 = arith.constant 0 : i32
    %c0_i32_1 = arith.constant 0 : i32
    return %arg0, %c0_i32, %c0_i32_0 : i32, i32, i32
  }
  func.func @transform_5(%arg0: i32) -> (i32, i32, i32) {
    %c0_i32 = arith.constant 0 : i32
    %c0_i32_0 = arith.constant 0 : i32
    %c0_i32_1 = arith.constant 0 : i32
    return %arg0, %c0_i32, %c0_i32_0 : i32, i32, i32
  }
}

module attributes {stable_mosaic.version = 11 : i64} {
  func.func @_conv_kernel(%arg0: i32, %arg1: memref<2x16x128xbf16, #tpu.memory_space<vmem>>, %arg2: memref<3x128x128xbf16, #tpu.memory_space<vmem>>, %arg3: memref<1x128xf32, #tpu.memory_space<vmem>>, %arg4: memref<1x128xf32, #tpu.memory_space<vmem>>, %arg5: memref<1x128xf32, #tpu.memory_space<vmem>>, %arg6: memref<1x128xf32, #tpu.memory_space<vmem>>, %arg7: memref<2x16x128xf32, #tpu.memory_space<vmem>>, %arg8: memref<32x128xf32, #tpu.memory_space<vmem>>) attributes {dimension_semantics = [#tpu.dimension_semantics<parallel>], iteration_bounds = array<i64: 1>, scalar_prefetch = 0 : i64, scratch_operands = 1 : i64, tpu.core_type = #tpu.core_type<tc>, window_params = [{transform_indices = @transform_0, window_bounds = array<i64: 2, 16, 128>}, {pipeline_mode = #tpu.pipeline_mode<synchronous>, transform_indices = @transform_1, window_bounds = array<i64: 3, 128, 128>}, {pipeline_mode = #tpu.pipeline_mode<synchronous>, transform_indices = @transform_2, window_bounds = array<i64: 1, 128>}, {pipeline_mode = #tpu.pipeline_mode<synchronous>, transform_indices = @transform_3, window_bounds = array<i64: 1, 128>}, {pipeline_mode = #tpu.pipeline_mode<synchronous>, transform_indices = @transform_4, window_bounds = array<i64: 1, 128>}, {pipeline_mode = #tpu.pipeline_mode<synchronous>, transform_indices = @transform_5, window_bounds = array<i64: 1, 128>}, {transform_indices = @transform_6, window_bounds = array<i64: 2, 16, 128>}]} {
    %c0 = arith.constant 0 : index
    %c0_0 = arith.constant 0 : index
    %c0_1 = arith.constant 0 : index
    %0 = vector.load %arg1[%c0, %c0_0, %c0_1] : memref<2x16x128xbf16, #tpu.memory_space<vmem>>, vector<2x16x128xbf16>
    %1 = arith.extf %0 : vector<2x16x128xbf16> to vector<2x16x128xf32>
    %c0_2 = arith.constant 0 : index
    %c0_3 = arith.constant 0 : index
    %2 = vector.load %arg3[%c0_2, %c0_3] : memref<1x128xf32, #tpu.memory_space<vmem>>, vector<1x128xf32>
    %3 = vector.shape_cast %2 : vector<1x128xf32> to vector<1x1x128xf32>
    %4 = vector.broadcast %3 : vector<1x1x128xf32> to vector<2x16x128xf32>
    %5 = arith.mulf %1, %4 : vector<2x16x128xf32>
    %c0_4 = arith.constant 0 : index
    %c0_5 = arith.constant 0 : index
    %6 = vector.load %arg4[%c0_4, %c0_5] : memref<1x128xf32, #tpu.memory_space<vmem>>, vector<1x128xf32>
    %7 = vector.shape_cast %6 : vector<1x128xf32> to vector<1x1x128xf32>
    %8 = vector.broadcast %7 : vector<1x1x128xf32> to vector<2x16x128xf32>
    %9 = arith.addf %5, %8 : vector<2x16x128xf32>
    %cst = arith.constant 0.000000e+00 : f32
    %10 = vector.broadcast %cst : f32 to vector<2x16x128xf32>
    %11 = arith.maximumf %9, %10 : vector<2x16x128xf32>
    %12 = arith.truncf %11 : vector<2x16x128xf32> to vector<2x16x128xbf16>
    %13 = tpu.iota {dimensions = array<i32: 1>} : vector<2x16x1xi32>
    %c15_i32 = arith.constant 15 : i32
    %14 = vector.broadcast %c15_i32 : i32 to vector<2x16x1xi32>
    %15 = arith.cmpi eq, %13, %14 : vector<2x16x1xi32>
    %cst_6 = arith.constant 0.000000e+00 : f32
    %16 = arith.truncf %cst_6 : f32 to bf16
    %17 = vector.shape_cast %15 : vector<2x16x1xi1> to vector<2x16x1xi1>
    %18 = vector.broadcast %17 : vector<2x16x1xi1> to vector<2x16x128xi1>
    %19 = vector.broadcast %16 : bf16 to vector<2x16x128xbf16>
    %20 = arith.select %18, %19, %12 : vector<2x16x128xi1>, vector<2x16x128xbf16>
    %c0_i32 = arith.constant 0 : i32
    %21 = vector.broadcast %c0_i32 : i32 to vector<2x16x1xi32>
    %22 = arith.cmpi eq, %13, %21 : vector<2x16x1xi32>
    %cst_7 = arith.constant 0.000000e+00 : f32
    %23 = arith.truncf %cst_7 : f32 to bf16
    %24 = vector.shape_cast %22 : vector<2x16x1xi1> to vector<2x16x1xi1>
    %25 = vector.broadcast %24 : vector<2x16x1xi1> to vector<2x16x128xi1>
    %26 = vector.broadcast %23 : bf16 to vector<2x16x128xbf16>
    %27 = arith.select %25, %26, %12 : vector<2x16x128xi1>, vector<2x16x128xbf16>
    %28 = vector.shape_cast %12 : vector<2x16x128xbf16> to vector<32x128xbf16>
    %29 = vector.shape_cast %20 : vector<2x16x128xbf16> to vector<32x128xbf16>
    %30 = vector.shape_cast %27 : vector<2x16x128xbf16> to vector<32x128xbf16>
    %c1 = arith.constant 1 : index
    %c0_8 = arith.constant 0 : index
    %c0_9 = arith.constant 0 : index
    %31 = vector.load %arg2[%c1, %c0_8, %c0_9] : memref<3x128x128xbf16, #tpu.memory_space<vmem>>, vector<1x128x128xbf16>
    %32 = vector.shape_cast %31 : vector<1x128x128xbf16> to vector<128x128xbf16>
    %cst_10 = arith.constant dense<0.000000e+00> : vector<32x128xf32>
    %33 = tpu.matmul %28, %32, %cst_10 {dimension_numbers = #tpu.dot_dimension_numbers<[1], [0], [0], [1], [0, 0, 1, 1], [], []>} : vector<32x128xbf16>, vector<128x128xbf16>, vector<32x128xf32> -> vector<32x128xf32>
    %c0_11 = arith.constant 0 : index
    %c0_12 = arith.constant 0 : index
    %34 = vector.load %arg8[%c0_11, %c0_12] : memref<32x128xf32, #tpu.memory_space<vmem>>, vector<32x128xf32>
    tpu.vector_store %arg8[%c0_11, %c0_12], %33 {strides = array<i32>} : memref<32x128xf32, #tpu.memory_space<vmem>>, vector<32x128xf32>,
    %c1_13 = arith.constant 1 : index
    %c0_14 = arith.constant 0 : index
    %35 = vector.load %arg8[%c1_13, %c0_14] : memref<32x128xf32, #tpu.memory_space<vmem>>, vector<31x128xf32>
    %36 = vector.extract_strided_slice %29 {offsets = [0, 0], sizes = [31, 128], strides = [1, 1]} : vector<32x128xbf16> to vector<31x128xbf16>
    %c0_15 = arith.constant 0 : index
    %c0_16 = arith.constant 0 : index
    %c0_17 = arith.constant 0 : index
    %37 = vector.load %arg2[%c0_15, %c0_16, %c0_17] : memref<3x128x128xbf16, #tpu.memory_space<vmem>>, vector<1x128x128xbf16>
    %38 = vector.shape_cast %37 : vector<1x128x128xbf16> to vector<128x128xbf16>
    %cst_18 = arith.constant dense<0.000000e+00> : vector<31x128xf32>
    %39 = tpu.matmul %36, %38, %cst_18 {dimension_numbers = #tpu.dot_dimension_numbers<[1], [0], [0], [1], [0, 0, 1, 1], [], []>} : vector<31x128xbf16>, vector<128x128xbf16>, vector<31x128xf32> -> vector<31x128xf32>
    %40 = arith.addf %35, %39 : vector<31x128xf32>
    %c1_19 = arith.constant 1 : index
    %c0_20 = arith.constant 0 : index
    %41 = vector.load %arg8[%c1_19, %c0_20] : memref<32x128xf32, #tpu.memory_space<vmem>>, vector<31x128xf32>
    tpu.vector_store %arg8[%c1_19, %c0_20], %40 {strides = array<i32>} : memref<32x128xf32, #tpu.memory_space<vmem>>, vector<31x128xf32>,
    %c0_21 = arith.constant 0 : index
    %c0_22 = arith.constant 0 : index
    %42 = vector.load %arg8[%c0_21, %c0_22] : memref<32x128xf32, #tpu.memory_space<vmem>>, vector<31x128xf32>
    %43 = vector.extract_strided_slice %30 {offsets = [1, 0], sizes = [31, 128], strides = [1, 1]} : vector<32x128xbf16> to vector<31x128xbf16>
    %c2 = arith.constant 2 : index
    %c0_23 = arith.constant 0 : index
    %c0_24 = arith.constant 0 : index
    %44 = vector.load %arg2[%c2, %c0_23, %c0_24] : memref<3x128x128xbf16, #tpu.memory_space<vmem>>, vector<1x128x128xbf16>
    %45 = vector.shape_cast %44 : vector<1x128x128xbf16> to vector<128x128xbf16>
    %cst_25 = arith.constant dense<0.000000e+00> : vector<31x128xf32>
    %46 = tpu.matmul %43, %45, %cst_25 {dimension_numbers = #tpu.dot_dimension_numbers<[1], [0], [0], [1], [0, 0, 1, 1], [], []>} : vector<31x128xbf16>, vector<128x128xbf16>, vector<31x128xf32> -> vector<31x128xf32>
    %47 = arith.addf %42, %46 : vector<31x128xf32>
    %c0_26 = arith.constant 0 : index
    %c0_27 = arith.constant 0 : index
    %48 = vector.load %arg8[%c0_26, %c0_27] : memref<32x128xf32, #tpu.memory_space<vmem>>, vector<31x128xf32>
    tpu.vector_store %arg8[%c0_26, %c0_27], %47 {strides = array<i32>} : memref<32x128xf32, #tpu.memory_space<vmem>>, vector<31x128xf32>,
    %c0_28 = arith.constant 0 : index
    %c0_29 = arith.constant 0 : index
    %49 = vector.load %arg8[%c0_28, %c0_29] : memref<32x128xf32, #tpu.memory_space<vmem>>, vector<32x128xf32>
    %c0_30 = arith.constant 0 : index
    %c0_31 = arith.constant 0 : index
    %50 = vector.load %arg5[%c0_30, %c0_31] : memref<1x128xf32, #tpu.memory_space<vmem>>, vector<1x128xf32>
    %51 = vector.broadcast %50 : vector<1x128xf32> to vector<32x128xf32>
    %52 = arith.mulf %49, %51 : vector<32x128xf32>
    %c0_32 = arith.constant 0 : index
    %c0_33 = arith.constant 0 : index
    %53 = vector.load %arg6[%c0_32, %c0_33] : memref<1x128xf32, #tpu.memory_space<vmem>>, vector<1x128xf32>
    %54 = vector.broadcast %53 : vector<1x128xf32> to vector<32x128xf32>
    %55 = arith.addf %52, %54 : vector<32x128xf32>
    %cst_34 = arith.constant 0.000000e+00 : f32
    %56 = vector.broadcast %cst_34 : f32 to vector<32x128xf32>
    %57 = arith.maximumf %55, %56 : vector<32x128xf32>
    %58 = vector.shape_cast %57 : vector<32x128xf32> to vector<2x16x128xf32>
    %c0_35 = arith.constant 0 : index
    %c0_36 = arith.constant 0 : index
    %c0_37 = arith.constant 0 : index
    %59 = vector.load %arg7[%c0_35, %c0_36, %c0_37] : memref<2x16x128xf32, #tpu.memory_space<vmem>>, vector<2x16x128xf32>
    tpu.vector_store %arg7[%c0_35, %c0_36, %c0_37], %58 {strides = array<i32>} : memref<2x16x128xf32, #tpu.memory_space<vmem>>, vector<2x16x128xf32>,
    return
  }
  func.func @transform_0(%arg0: i32) -> (i32, i32, i32) {
    %c0_i32 = arith.constant 0 : i32
    %c0_i32_0 = arith.constant 0 : i32
    %c0_i32_1 = arith.constant 0 : i32
    return %arg0, %c0_i32, %c0_i32_0 : i32, i32, i32
  }
  func.func @transform_1(%arg0: i32) -> (i32, i32, i32) {
    %c0_i32 = arith.constant 0 : i32
    %c0_i32_0 = arith.constant 0 : i32
    %c0_i32_1 = arith.constant 0 : i32
    %c0_i32_2 = arith.constant 0 : i32
    return %c0_i32, %c0_i32_0, %c0_i32_1 : i32, i32, i32
  }
  func.func @transform_2(%arg0: i32) -> (i32, i32) {
    %c0_i32 = arith.constant 0 : i32
    %c0_i32_0 = arith.constant 0 : i32
    %c0_i32_1 = arith.constant 0 : i32
    return %c0_i32, %c0_i32_0 : i32, i32
  }
  func.func @transform_3(%arg0: i32) -> (i32, i32) {
    %c0_i32 = arith.constant 0 : i32
    %c0_i32_0 = arith.constant 0 : i32
    %c0_i32_1 = arith.constant 0 : i32
    return %c0_i32, %c0_i32_0 : i32, i32
  }
  func.func @transform_4(%arg0: i32) -> (i32, i32) {
    %c0_i32 = arith.constant 0 : i32
    %c0_i32_0 = arith.constant 0 : i32
    %c0_i32_1 = arith.constant 0 : i32
    return %c0_i32, %c0_i32_0 : i32, i32
  }
  func.func @transform_5(%arg0: i32) -> (i32, i32) {
    %c0_i32 = arith.constant 0 : i32
    %c0_i32_0 = arith.constant 0 : i32
    %c0_i32_1 = arith.constant 0 : i32
    return %c0_i32, %c0_i32_0 : i32, i32
  }
  func.func @transform_6(%arg0: i32) -> (i32, i32, i32) {
    %c0_i32 = arith.constant 0 : i32
    %c0_i32_0 = arith.constant 0 : i32
    %c0_i32_1 = arith.constant 0 : i32
    return %arg0, %c0_i32, %c0_i32_0 : i32, i32, i32
  }
}

</mosaic_0001>

<llo_original>
// kernel: tile.28
$region0: #{tile.28}
  #allocation0 [shape = 's32[1]{0}', space=sflag, size = 0x4, scoped, tag = 'scoped memory for tile.28']
  %s0 = inlined_call_operand.vmem [shape: f32[8], index: 0, kind: input, shape index: {}]
  %s1 = inlined_call_operand.vmem [shape: f32[16,8], index: 1, kind: output, shape index: {}]
  // Predicated region
  $region2: #{tile.28} parent=0 // pred_check
    _
  $region3: #{tile.28} parent=0 // pred_check_branch
    %3 = sbr.rel (0) target = $region5
  $region4: #{tile.28} parent=0 // pred_region
    _
  $region5: #{tile.28} parent=0 // pred_fallthru
    _
  %v4 = vld [vmem:[%s0] ss:$0 sm:$0xff]
  %5 = vst [vmem:[%s1] sm:$0xff] %v4
  %s6 = scalar_lea.vmem %s1, 8
  %7 = vst [vmem:[%s6] sm:$0xff] %v4

// kernel: tile.29
$region0: #{tile.29}
  %s0 = inlined_call_operand.vmem [shape: f32[16,8], index: 0, kind: input, shape index: {}]
  %s1 = inlined_call_operand.vmem [shape: f32[1,128], index: 1, kind: output, shape index: {}]
  $region1: #{tile.29} parent=0
    #allocation0 [shape = 'u8[4096]{0}', space=vmem, size = 0x1000, scoped, tag = 'scoped mem for output reshape']
    %v2 = vld [vmem:[%s0] sm:$0x1]
    %vm3 = vcmask 64512
    %4 = vst.msk [vmem:[#allocation0] sm:$0x1] %vm3, %v2
    %s5 = scalar_lea.vmem %s0, 15
    %v6 = vld [vmem:[%s5] sm:$0x1]
    %7 = vrot.lane.b32.xlu0 %v6, 120
    %v8 = vpop.permute.xlu0 %7
    %vm9 = vcmask 1048512
    %10 = vst.msk [vmem:[#allocation0] sm:$0x1] %vm9, %v8
    %s11 = scalar_lea.vmem %s0, 14
    %v12 = vld [vmem:[%s11] sm:$0x1]
    %13 = vrot.lane.b32.xlu0 %v12, 112
    %v14 = vpop.permute.xlu0 %13
    %vm15 = vcmask 982912
    %16 = vst.msk [vmem:[#allocation0] sm:$0x1] %vm15, %v14
    %s17 = scalar_lea.vmem %s0, 13
    %v18 = vld [vmem:[%s17] sm:$0x1]
    %19 = vrot.lane.b32.xlu0 %v18, 104
    %v20 = vpop.permute.xlu0 %19
    %vm21 = vcmask 917312
    %22 = vst.msk [vmem:[#allocation0] sm:$0x1] %vm21, %v20
    %s23 = scalar_lea.vmem %s0, 12
    %v24 = vld [vmem:[%s23] sm:$0x1]
    %25 = vrot.lane.b32.xlu0 %v24, 96
    %v26 = vpop.permute.xlu0 %25
    %vm27 = vcmask 851712
    %28 = vst.msk [vmem:[#allocation0] sm:$0x1] %vm27, %v26
    %s29 = scalar_lea.vmem %s0, 11
    %v30 = vld [vmem:[%s29] sm:$0x1]
    %31 = vrot.lane.b32.xlu0 %v30, 88
    %v32 = vpop.permute.xlu0 %31
    %vm33 = vcmask 786112
    %34 = vst.msk [vmem:[#allocation0] sm:$0x1] %vm33, %v32
    %s35 = scalar_lea.vmem %s0, 10
    %v36 = vld [vmem:[%s35] sm:$0x1]
    %37 = vrot.lane.b32.xlu0 %v36, 80
    %v38 = vpop.permute.xlu0 %37
    %vm39 = vcmask 720512
    %40 = vst.msk [vmem:[#allocation0] sm:$0x1] %vm39, %v38
    %s41 = scalar_lea.vmem %s0, 9
    %v42 = vld [vmem:[%s41] sm:$0x1]
    %43 = vrot.lane.b32.xlu0 %v42, 72
    %v44 = vpop.permute.xlu0 %43
    %vm45 = vcmask 654912
    %46 = vst.msk [vmem:[#allocation0] sm:$0x1] %vm45, %v44
    %s47 = scalar_lea.vmem %s0, 8
    %v48 = vld [vmem:[%s47] sm:$0x1]
    %49 = vrot.lane.b32.xlu0 %v48, 64
    %v50 = vpop.permute.xlu0 %49
    %vm51 = vcmask 589312
    %52 = vst.msk [vmem:[#allocation0] sm:$0x1] %vm51, %v50
    %s53 = scalar_lea.vmem %s0, 7
    %v54 = vld [vmem:[%s53] sm:$0x1]
    %55 = vrot.lane.b32.xlu0 %v54, 56
    %v56 = vpop.permute.xlu0 %55
    %vm57 = vcmask 523712
    %58 = vst.msk [vmem:[#allocation0] sm:$0x1] %vm57, %v56
    %s59 = scalar_lea.vmem %s0, 6
    %v60 = vld [vmem:[%s59] sm:$0x1]
    %61 = vrot.lane.b32.xlu0 %v60, 48
    %v62 = vpop.permute.xlu0 %61
    %vm63 = vcmask 458112
    %64 = vst.msk [vmem:[#allocation0] sm:$0x1] %vm63, %v62
    %s65 = scalar_lea.vmem %s0, 5
    %v66 = vld [vmem:[%s65] sm:$0x1]
    %67 = vrot.lane.b32.xlu0 %v66, 40
    %v68 = vpop.permute.xlu0 %67
    %vm69 = vcmask 392512
    %70 = vst.msk [vmem:[#allocation0] sm:$0x1] %vm69, %v68
    %s71 = scalar_lea.vmem %s0, 4
    %v72 = vld [vmem:[%s71] sm:$0x1]
    %73 = vrot.lane.b32.xlu0 %v72, 32
    %v74 = vpop.permute.xlu0 %73
    %vm75 = vcmask 326912
    %76 = vst.msk [vmem:[#allocation0] sm:$0x1] %vm75, %v74
    %s77 = scalar_lea.vmem %s0, 3
    %v78 = vld [vmem:[%s77] sm:$0x1]
    %79 = vrot.lane.b32.xlu0 %v78, 24
    %v80 = vpop.permute.xlu0 %79
    %vm81 = vcmask 261312
    %82 = vst.msk [vmem:[#allocation0] sm:$0x1] %vm81, %v80
    %s83 = scalar_lea.vmem %s0, 2
    %v84 = vld [vmem:[%s83] sm:$0x1]
    %85 = vrot.lane.b32.xlu0 %v84, 16
    %v86 = vpop.permute.xlu0 %85
    %vm87 = vcmask 195712
    %88 = vst.msk [vmem:[#allocation0] sm:$0x1] %vm87, %v86
    %s89 = scalar_lea.vmem %s0, 1
    %v90 = vld [vmem:[%s89] sm:$0x1]
    %91 = vrot.lane.b32.xlu0 %v90, 8
    %v92 = vpop.permute.xlu0 %91
    %vm93 = vcmask 130112
    %94 = vst.msk [vmem:[#allocation0] sm:$0x1] %vm93, %v92
    %s96 = ssub.s32 2, 1
    %v97 = vld [vmem:[#allocation0] sm:%s96]
    %s99 = ssub.s32 2, 1
    %100 = vst [vmem:[%s1] sm:%s99] %v97

// kernel: double_convolution.3
$region0: #{double_convolution.3}
  #allocation0 [shape = 'u32[]', space=smem, size = 0x4, offset = 0x4, fixed_abs, tag = 'smem constant byte address 0x4 - core index']
  #allocation1 [shape = 'u32[72,128]{1,0:T(1,128)}', space=vmem, size = 0x9000, scoped, tag = 'internal scratch']
  #allocation2 [shape = 'f32[32,128]{1,0:T(8,128)}', space=vmem, size = 0x4000, scoped, tag = 'scratch operand']
  %s0 = inlined_call_operand.vmem [shape: bf16[2,16,64], index: 0, kind: input, shape index: {}]
  %s1 = inlined_call_operand.vmem [shape: bf16[3,64,128], index: 1, kind: input, shape index: {}]
  %s2 = inlined_call_operand.vmem [shape: bf16[2,16,128], index: 2, kind: output, shape index: {0}]
  %s3 = inlined_call_operand.vmem [shape: f32[1,1,128], index: 3, kind: output, shape index: {1}]
  %s4 = inlined_call_operand.vmem [shape: f32[1,1,128], index: 4, kind: output, shape index: {2}]
  %5 = xla_tuple %s2, %s3, %s4
  %s6 = sld [smem:[#allocation0]]
  $region34: #{double_convolution.3} parent=0
    _
  %s8 = ssub.s32 1, %s6
  %s9 = scalar_select 0, %s8, %s6
  // Predicated region
  $region2: #{double_convolution.3} parent=0 // pred_check
    _
  $region3: #{double_convolution.3} parent=0 // pred_check_branch
    %11 = sbr.rel (0) target = $region5
  $region4: #{double_convolution.3} parent=0 // pred_region
    _
  $region5: #{double_convolution.3} parent=0 // pred_fallthru
    _
  // Predicated region
  $region6: #{double_convolution.3} parent=0 // pred_check
    _
  $region7: #{double_convolution.3} parent=0 // pred_check_branch
    %13 = sbr.rel (0) target = $region9
  $region8: #{double_convolution.3} parent=0 // pred_region
    _
  $region9: #{double_convolution.3} parent=0 // pred_fallthru
    _
  %v15 = vld [vmem:[%s0] sm:$0xf]
  %v16 = vld [vmem:[%s0 + $0x4] sm:$0xf]
  %v17 = vld [vmem:[%s0 + $0x8] sm:$0xf]
  %v18 = vld [vmem:[%s0 + $0xc] sm:$0xf]
  %v19 = vlaneseq
  %v20 = vshrl.u32 %v19, 7
  %v21 = vadd.s32 %v20, 8
  %vm22 = vcmp.eq.s32.totalorder %v20, 15
  %vm23 = vcmp.eq.s32.totalorder %v21, 15
  %v24 = vsel %vm22, 1, 0
  %v25 = vsel %vm23, 1, 0
  %vm26 = vcmp.eq.s32.totalorder %v24, 1
  %vm27 = vcmp.eq.s32.totalorder %v25, 1
  %vm28 = vmpackc.low %vm26, %vm26
  %vm29 = vmpackc.low %vm27, %vm27
  %v30 = vsel %vm28, 0, %v15
  %v31 = vsel %vm29, 0, %v16
  %v32 = vsel %vm28, 0, %v17
  %v33 = vsel %vm29, 0, %v18
  %vm34 = vcmp.eq.s32.totalorder %v20, 0
  %vm35 = vcmp.eq.s32.totalorder %v21, 0
  %v36 = vsel %vm34, 1, 0
  %v37 = vsel %vm35, 1, 0
  %vm38 = vcmp.eq.s32.totalorder %v36, 1
  %vm39 = vcmp.eq.s32.totalorder %v37, 1
  %vm40 = vmpackc.low %vm38, %vm38
  %vm41 = vmpackc.low %vm39, %vm39
  %v42 = vsel %vm40, 0, %v15
  %v43 = vsel %vm41, 0, %v16
  %v44 = vsel %vm40, 0, %v17
  %v45 = vsel %vm41, 0, %v18
  %s46 = scalar_lea.vmem %s1, 32
  %v47 = vld [vmem:[%s46] sm:$0xf]
  %v48 = vld [vmem:[%s46 + $0x4] sm:$0xf]
  %v49 = vld [vmem:[%s46 + $0x8] sm:$0xf]
  %v50 = vld [vmem:[%s46 + $0xc] sm:$0xf]
  %v51 = vld [vmem:[%s46 + $0x10] sm:$0xf]
  %v52 = vld [vmem:[%s46 + $0x14] sm:$0xf]
  %v53 = vld [vmem:[%s46 + $0x18] sm:$0xf]
  %v54 = vld [vmem:[%s46 + $0x1c] sm:$0xf]
  %v59 = vunpack.c.l.b16 %v15
  %v60 = vunpack.c.l.b16 %v16
  %v61 = vunpack.c.l.b16 %v17
  %v62 = vunpack.c.l.b16 %v18
  %v63 = vpack.c.b16 %v60, %v59
  %v64 = vpack.c.b16 %v62, %v61
  %v73 = vunpack.c.l.b16 %v47
  %v74 = vunpack.c.l.b16 %v48
  %v75 = vunpack.c.l.b16 %v49
  %v76 = vunpack.c.l.b16 %v50
  %v77 = vunpack.c.l.b16 %v51
  %v78 = vunpack.c.l.b16 %v52
  %v79 = vunpack.c.l.b16 %v53
  %v80 = vunpack.c.l.b16 %v54
  %v81 = vpack.c.b16 %v74, %v73
  %v82 = vpack.c.b16 %v76, %v75
  %v83 = vpack.c.b16 %v78, %v77
  %v84 = vpack.c.b16 %v80, %v79
  %vm89 = vcmask 523264
  %v91 = vsel %vm89, %v63, 0
  %v94 = vsel %vm89, %v64, 0
  %96 = vmatpush.bf16.msra.mxu0 0
  %97 = vmatpush.bf16.msra.mxu0 0
  %98 = vmatpush.bf16.msra.mxu0 0
  %99 = vmatpush.bf16.msra.mxu0 0
  %100 = vmatpush.bf16.msra.mxu0 %v84
  %101 = vmatpush.bf16.msra.mxu0 %v83
  %102 = vmatpush.bf16.msra.mxu0 %v82
  %103 = vmatpush.bf16.msra.mxu0 %v81
  %104 = vmatmul.bf16.gmra.mxu0 %v91
  %v105 = vpop.f32.mrf.mxu0
  %v106 = vadd.f32 0.0, %v105
  %v107 = vpop.f32.mrf.mxu0
  %v108 = vadd.f32 0.0, %v107
  %109 = vmatmul.bf16.gmra.mxu0 %v94
  %v110 = vpop.f32.mrf.mxu0
  %v111 = vadd.f32 0.0, %v110
  %v112 = vpop.f32.mrf.mxu0
  %v113 = vadd.f32 0.0, %v112
  %114 = vdwg.mxu0
  %115 = vst [vmem:[#allocation2] sm:$0xff] %v106
  %116 = vst [vmem:[#allocation2 + $0x8] sm:$0xff] %v108
  %117 = vst [vmem:[#allocation2 + $0x10] sm:$0xff] %v111
  %118 = vst [vmem:[#allocation2 + $0x18] sm:$0xff] %v113
  %v119 = vld [vmem:[#allocation2 + $0x1] sm:$0xff]
  %v120 = vld [vmem:[#allocation2 + $0x9] sm:$0xff]
  %v121 = vld [vmem:[#allocation2 + $0x11] sm:$0xff]
  %v122 = vld [vmem:[#allocation2 + $0x19] sm:$0x7f]
  %v123 = vld [vmem:[%s1] sm:$0xf]
  %v124 = vld [vmem:[%s1 + $0x4] sm:$0xf]
  %v125 = vld [vmem:[%s1 + $0x8] sm:$0xf]
  %v126 = vld [vmem:[%s1 + $0xc] sm:$0xf]
  %v127 = vld [vmem:[%s1 + $0x10] sm:$0xf]
  %v128 = vld [vmem:[%s1 + $0x14] sm:$0xf]
  %v129 = vld [vmem:[%s1 + $0x18] sm:$0xf]
  %v130 = vld [vmem:[%s1 + $0x1c] sm:$0xf]
  %v135 = vunpack.c.l.b16 %v30
  %v136 = vunpack.c.l.b16 %v31
  %v137 = vunpack.c.l.b16 %v32
  %v138 = vunpack.c.l.b16 %v33
  %v139 = vpack.c.b16 %v136, %v135
  %v140 = vpack.c.b16 %v138, %v137
  %v149 = vunpack.c.l.b16 %v123
  %v150 = vunpack.c.l.b16 %v124
  %v151 = vunpack.c.l.b16 %v125
  %v152 = vunpack.c.l.b16 %v126
  %v153 = vunpack.c.l.b16 %v127
  %v154 = vunpack.c.l.b16 %v128
  %v155 = vunpack.c.l.b16 %v129
  %v156 = vunpack.c.l.b16 %v130
  %v157 = vpack.c.b16 %v150, %v149
  %v158 = vpack.c.b16 %v152, %v151
  %v159 = vpack.c.b16 %v154, %v153
  %v160 = vpack.c.b16 %v156, %v155
  %v166 = vsel %vm89, %v139, 0
  %v169 = vsel %vm89, %v140, 0
  %171 = vmatpush.bf16.msra.mxu0 0
  %172 = vmatpush.bf16.msra.mxu0 0
  %173 = vmatpush.bf16.msra.mxu0 0
  %174 = vmatpush.bf16.msra.mxu0 0
  %175 = vmatpush.bf16.msra.mxu0 %v160
  %176 = vmatpush.bf16.msra.mxu0 %v159
  %177 = vmatpush.bf16.msra.mxu0 %v158
  %178 = vmatpush.bf16.msra.mxu0 %v157
  %179 = vmatmul.bf16.gmra.mxu0 %v166
  %v180 = vpop.f32.mrf.mxu0
  %v181 = vadd.f32 0.0, %v180
  %v182 = vpop.f32.mrf.mxu0
  %v183 = vadd.f32 0.0, %v182
  %184 = vmatmul.bf16.gmra.mxu0 %v169
  %v185 = vpop.f32.mrf.mxu0
  %v186 = vadd.f32 0.0, %v185
  %v187 = vpop.f32.mrf.mxu0
  %v188 = vadd.f32 0.0, %v187
  %189 = vdwg.mxu0
  %v190 = vadd.f32 %v119, %v181
  %v191 = vadd.f32 %v120, %v183
  %v192 = vadd.f32 %v121, %v186
  %v193 = vadd.f32 %v122, %v188
  %194 = vst [vmem:[#allocation2 + $0x1] sm:$0xff] %v190
  %195 = vst [vmem:[#allocation2 + $0x9] sm:$0xff] %v191
  %196 = vst [vmem:[#allocation2 + $0x11] sm:$0xff] %v192
  %197 = vst [vmem:[#allocation2 + $0x19] sm:$0x7f] %v193
  %v198 = vld [vmem:[#allocation2] sm:$0xff]
  %v199 = vld [vmem:[#allocation2 + $0x8] sm:$0xff]
  %v200 = vld [vmem:[#allocation2 + $0x10] sm:$0xff]
  %v201 = vld [vmem:[#allocation2 + $0x18] sm:$0x7f]
  %s202 = scalar_lea.vmem %s1, 64
  %v203 = vld [vmem:[%s202] sm:$0xf]
  %v204 = vld [vmem:[%s202 + $0x4] sm:$0xf]
  %v205 = vld [vmem:[%s202 + $0x8] sm:$0xf]
  %v206 = vld [vmem:[%s202 + $0xc] sm:$0xf]
  %v207 = vld [vmem:[%s202 + $0x10] sm:$0xf]
  %v208 = vld [vmem:[%s202 + $0x14] sm:$0xf]
  %v209 = vld [vmem:[%s202 + $0x18] sm:$0xf]
  %v210 = vld [vmem:[%s202 + $0x1c] sm:$0xf]
  %v215 = vunpack.c.l.b16 %v42
  %v216 = vunpack.c.l.b16 %v43
  %v217 = vunpack.c.l.b16 %v44
  %v218 = vunpack.c.l.b16 %v45
  %v219 = vpack.c.b16 %v216, %v215
  %v220 = vpack.c.b16 %v218, %v217
  %vm221 = vsmask.f32 7424
  %v223 = vshrl.u32 %v219, 16
  %v225 = vshll.u32 %v219, 16
  %v227 = vrot.slane %v225, 1
  %v228 = vor.u32 %v223, %v227
  %v230 = vshll.u32 %v220, 16
  %v232 = vrot.slane %v230, 1
  %v233 = vsel %vm221, %v228, %v232
  %v234 = vshrl.u32 %v220, 16
  %v236 = vor.u32 %v234, %v232
  %v245 = vunpack.c.l.b16 %v203
  %v246 = vunpack.c.l.b16 %v204
  %v247 = vunpack.c.l.b16 %v205
  %v248 = vunpack.c.l.b16 %v206
  %v249 = vunpack.c.l.b16 %v207
  %v250 = vunpack.c.l.b16 %v208
  %v251 = vunpack.c.l.b16 %v209
  %v252 = vunpack.c.l.b16 %v210
  %v253 = vpack.c.b16 %v246, %v245
  %v254 = vpack.c.b16 %v248, %v247
  %v255 = vpack.c.b16 %v250, %v249
  %v256 = vpack.c.b16 %v252, %v251
  %v262 = vsel %vm89, %v233, 0
  %v265 = vsel %vm89, %v236, 0
  %267 = vmatpush.bf16.msra.mxu0 0
  %268 = vmatpush.bf16.msra.mxu0 0
  %269 = vmatpush.bf16.msra.mxu0 0
  %270 = vmatpush.bf16.msra.mxu0 0
  %271 = vmatpush.bf16.msra.mxu0 %v256
  %272 = vmatpush.bf16.msra.mxu0 %v255
  %273 = vmatpush.bf16.msra.mxu0 %v254
  %274 = vmatpush.bf16.msra.mxu0 %v253
  %275 = vmatmul.bf16.gmra.mxu0 %v262
  %v276 = vpop.f32.mrf.mxu0
  %v277 = vadd.f32 0.0, %v276
  %v278 = vpop.f32.mrf.mxu0
  %v279 = vadd.f32 0.0, %v278
  %280 = vmatmul.bf16.gmra.mxu0 %v265
  %v281 = vpop.f32.mrf.mxu0
  %v282 = vadd.f32 0.0, %v281
  %v283 = vpop.f32.mrf.mxu0
  %v284 = vadd.f32 0.0, %v283
  %285 = vdwg.mxu0
  %v286 = vadd.f32 %v198, %v277
  %v287 = vadd.f32 %v199, %v279
  %v288 = vadd.f32 %v200, %v282
  %v289 = vadd.f32 %v201, %v284
  %290 = vst [vmem:[#allocation2] sm:$0xff] %v286
  %291 = vst [vmem:[#allocation2 + $0x8] sm:$0xff] %v287
  %292 = vst [vmem:[#allocation2 + $0x10] sm:$0xff] %v288
  %293 = vst [vmem:[#allocation2 + $0x18] sm:$0x7f] %v289
  %v294 = vld [vmem:[#allocation2] sm:$0xff]
  %v295 = vld [vmem:[#allocation2 + $0x8] sm:$0xff]
  %v296 = vld [vmem:[#allocation2 + $0x10] sm:$0xff]
  %v297 = vld [vmem:[#allocation2 + $0x18] sm:$0xff]
  %v298 = vadd.f32 %v294, %v295
  %v299 = vadd.f32 %v298, %v296
  %v300 = vadd.f32 %v299, %v297
  %v301 = vrot.slane %v300, 4
  %v302 = vadd.f32 %v300, %v301
  %v303 = vrot.slane %v302, 2
  %v304 = vadd.f32 %v302, %v303
  %v305 = vrot.slane %v304, 1
  %v306 = vadd.f32 %v304, %v305
  %307 = vst [vmem:[%s3] sm:$0x1] %v306
  %v308 = vmul.f32 %v294, %v294
  %v309 = vmul.f32 %v295, %v295
  %v310 = vmul.f32 %v296, %v296
  %v311 = vmul.f32 %v297, %v297
  %v312 = vadd.f32 %v308, %v309
  %v313 = vadd.f32 %v312, %v310
  %v314 = vadd.f32 %v313, %v311
  %v315 = vrot.slane %v314, 4
  %v316 = vadd.f32 %v314, %v315
  %v317 = vrot.slane %v316, 2
  %v318 = vadd.f32 %v316, %v317
  %v319 = vrot.slane %v318, 1
  %v320 = vadd.f32 %v318, %v319
  %321 = vst [vmem:[%s4] sm:$0x1] %v320
  %v322 = vpack.c.bf16 %v294, %v294
  %v323 = vpack.c.bf16 %v295, %v295
  %v324 = vpack.c.bf16 %v296, %v296
  %v325 = vpack.c.bf16 %v297, %v297
  %326 = vst [vmem:[%s2] sm:$0xf] %v322
  %327 = vst [vmem:[%s2 + $0x4] sm:$0xf] %v323
  %328 = vst [vmem:[%s2 + $0x8] sm:$0xf] %v324
  %329 = vst [vmem:[%s2 + $0xc] sm:$0xf] %v325
  // Predicated region
  $region10: #{double_convolution.3} parent=0 // pred_check
    _
  $region11: #{double_convolution.3} parent=0 // pred_check_branch
    %331 = sbr.rel (0) target = $region13
  $region12: #{double_convolution.3} parent=0 // pred_region
    _
  $region13: #{double_convolution.3} parent=0 // pred_fallthru
    _
  // Predicated region
  $region14: #{double_convolution.3} parent=0 // pred_check
    _
  $region15: #{double_convolution.3} parent=0 // pred_check_branch
    %333 = sbr.rel (0) target = $region17
  $region16: #{double_convolution.3} parent=0 // pred_region
    _
  $region17: #{double_convolution.3} parent=0 // pred_fallthru
    _
  // Predicated region
  $region18: #{double_convolution.3} parent=0 // pred_check
    _
  $region19: #{double_convolution.3} parent=0 // pred_check_branch
    %335 = sbr.rel (0) target = $region21
  $region20: #{double_convolution.3} parent=0 // pred_region
    _
  $region21: #{double_convolution.3} parent=0 // pred_fallthru
    _
  // Predicated region
  $region22: #{double_convolution.3} parent=0 // pred_check
    _
  $region23: #{double_convolution.3} parent=0 // pred_check_branch
    %337 = sbr.rel (0) target = $region25
  $region24: #{double_convolution.3} parent=0 // pred_region
    _
  $region25: #{double_convolution.3} parent=0 // pred_fallthru
    _
  // Predicated region
  $region26: #{double_convolution.3} parent=0 // pred_check
    _
  $region27: #{double_convolution.3} parent=0 // pred_check_branch
    %339 = sbr.rel (0) target = $region29
  $region28: #{double_convolution.3} parent=0 // pred_region
    _
  $region29: #{double_convolution.3} parent=0 // pred_fallthru
    _
  // Predicated region
  $region30: #{double_convolution.3} parent=0 // pred_check
    _
  $region31: #{double_convolution.3} parent=0 // pred_check_branch
    %341 = sbr.rel (0) target = $region33
  $region32: #{double_convolution.3} parent=0 // pred_region
    _
  $region33: #{double_convolution.3} parent=0 // pred_fallthru
    _

// kernel: double_convolution.4
$region0: #{double_convolution.4}
  #allocation0 [shape = 'u32[]', space=smem, size = 0x4, offset = 0x4, fixed_abs, tag = 'smem constant byte address 0x4 - core index']
  #allocation1 [shape = 'u32[72,128]{1,0:T(1,128)}', space=vmem, size = 0x9000, scoped, tag = 'internal scratch']
  #allocation2 [shape = 'f32[32,128]{1,0:T(8,128)}', space=vmem, size = 0x4000, scoped, tag = 'scratch operand']
  %s0 = inlined_call_operand.vmem [shape: bf16[2,16,128], index: 0, kind: input, shape index: {}]
  %s1 = inlined_call_operand.vmem [shape: bf16[3,128,128], index: 1, kind: input, shape index: {}]
  %s2 = inlined_call_operand.vmem [shape: f32[1,128], index: 2, kind: input, shape index: {}]
  %s3 = inlined_call_operand.vmem [shape: f32[1,128], index: 3, kind: input, shape index: {}]
  %s4 = inlined_call_operand.vmem [shape: f32[1,1,128], index: 4, kind: output, shape index: {0}]
  %s5 = inlined_call_operand.vmem [shape: f32[1,1,128], index: 5, kind: output, shape index: {1}]
  %6 = xla_tuple %s4, %s5
  %s7 = sld [smem:[#allocation0]]
  $region34: #{double_convolution.4} parent=0
    _
  %s9 = ssub.s32 1, %s7
  %s10 = scalar_select 0, %s9, %s7
  // Predicated region
  $region2: #{double_convolution.4} parent=0 // pred_check
    _
  $region3: #{double_convolution.4} parent=0 // pred_check_branch
    %12 = sbr.rel (0) target = $region5
  $region4: #{double_convolution.4} parent=0 // pred_region
    _
  $region5: #{double_convolution.4} parent=0 // pred_fallthru
    _
  // Predicated region
  $region6: #{double_convolution.4} parent=0 // pred_check
    _
  $region7: #{double_convolution.4} parent=0 // pred_check_branch
    %14 = sbr.rel (0) target = $region9
  $region8: #{double_convolution.4} parent=0 // pred_region
    _
  $region9: #{double_convolution.4} parent=0 // pred_fallthru
    _
  // Predicated region
  $region10: #{double_convolution.4} parent=0 // pred_check
    _
  $region11: #{double_convolution.4} parent=0 // pred_check_branch
    %16 = sbr.rel (0) target = $region13
  $region12: #{double_convolution.4} parent=0 // pred_region
    _
  $region13: #{double_convolution.4} parent=0 // pred_fallthru
    _
  // Predicated region
  $region14: #{double_convolution.4} parent=0 // pred_check
    _
  $region15: #{double_convolution.4} parent=0 // pred_check_branch
    %18 = sbr.rel (0) target = $region17
  $region16: #{double_convolution.4} parent=0 // pred_region
    _
  $region17: #{double_convolution.4} parent=0 // pred_fallthru
    _
  %v20 = vld [vmem:[%s0] sm:$0xf]
  %v21 = vld [vmem:[%s0 + $0x4] sm:$0xf]
  %v22 = vld [vmem:[%s0 + $0x8] sm:$0xf]
  %v23 = vld [vmem:[%s0 + $0xc] sm:$0xf]
  %v24 = vunpack.c.l.bf16 %v20
  %v25 = vunpack.c.l.bf16 %v21
  %v26 = vunpack.c.l.bf16 %v22
  %v27 = vunpack.c.l.bf16 %v23
  %v28 = vld [vmem:[%s2] sm:$0x1]
  %v30 = vperm.slane %v28, 0
  %v32 = vmul.f32 %v24, %v30
  %v33 = vmul.f32 %v25, %v30
  %v34 = vmul.f32 %v26, %v30
  %v35 = vmul.f32 %v27, %v30
  %v36 = vld [vmem:[%s3] sm:$0x1]
  %v38 = vperm.slane %v36, 0
  %v40 = vadd.f32 %v32, %v38
  %v41 = vadd.f32 %v33, %v38
  %v42 = vadd.f32 %v34, %v38
  %v43 = vadd.f32 %v35, %v38
  %v44 = vmax.f32 %v40, 0.0
  %v45 = vmax.f32 %v41, 0.0
  %v46 = vmax.f32 %v42, 0.0
  %v47 = vmax.f32 %v43, 0.0
  %v48 = vpack.c.bf16 %v44, %v44
  %v49 = vpack.c.bf16 %v45, %v45
  %v50 = vpack.c.bf16 %v46, %v46
  %v51 = vpack.c.bf16 %v47, %v47
  %v52 = vlaneseq
  %v53 = vshrl.u32 %v52, 7
  %v54 = vadd.s32 %v53, 8
  %vm55 = vcmp.eq.s32.totalorder %v53, 15
  %vm56 = vcmp.eq.s32.totalorder %v54, 15
  %v57 = vsel %vm55, 1, 0
  %v58 = vsel %vm56, 1, 0
  %vm59 = vcmp.eq.s32.totalorder %v57, 1
  %vm60 = vcmp.eq.s32.totalorder %v58, 1
  %vm61 = vmpackc.low %vm59, %vm59
  %vm62 = vmpackc.low %vm60, %vm60
  %v63 = vsel %vm61, 0, %v48
  %v64 = vsel %vm62, 0, %v49
  %v65 = vsel %vm61, 0, %v50
  %v66 = vsel %vm62, 0, %v51
  %vm67 = vcmp.eq.s32.totalorder %v53, 0
  %vm68 = vcmp.eq.s32.totalorder %v54, 0
  %v69 = vsel %vm67, 1, 0
  %v70 = vsel %vm68, 1, 0
  %vm71 = vcmp.eq.s32.totalorder %v69, 1
  %vm72 = vcmp.eq.s32.totalorder %v70, 1
  %vm73 = vmpackc.low %vm71, %vm71
  %vm74 = vmpackc.low %vm72, %vm72
  %v75 = vsel %vm73, 0, %v48
  %v76 = vsel %vm74, 0, %v49
  %v77 = vsel %vm73, 0, %v50
  %v78 = vsel %vm74, 0, %v51
  %s79 = scalar_lea.vmem %s1, 64
  %v80 = vld [vmem:[%s79] sm:$0xf]
  %v81 = vld [vmem:[%s79 + $0x4] sm:$0xf]
  %v82 = vld [vmem:[%s79 + $0x8] sm:$0xf]
  %v83 = vld [vmem:[%s79 + $0xc] sm:$0xf]
  %v84 = vld [vmem:[%s79 + $0x10] sm:$0xf]
  %v85 = vld [vmem:[%s79 + $0x14] sm:$0xf]
  %v86 = vld [vmem:[%s79 + $0x18] sm:$0xf]
  %v87 = vld [vmem:[%s79 + $0x1c] sm:$0xf]
  %v88 = vld [vmem:[%s79 + $0x20] sm:$0xf]
  %v89 = vld [vmem:[%s79 + $0x24] sm:$0xf]
  %v90 = vld [vmem:[%s79 + $0x28] sm:$0xf]
  %v91 = vld [vmem:[%s79 + $0x2c] sm:$0xf]
  %v92 = vld [vmem:[%s79 + $0x30] sm:$0xf]
  %v93 = vld [vmem:[%s79 + $0x34] sm:$0xf]
  %v94 = vld [vmem:[%s79 + $0x38] sm:$0xf]
  %v95 = vld [vmem:[%s79 + $0x3c] sm:$0xf]
  %v100 = vunpack.c.l.b16 %v48
  %v101 = vunpack.c.l.b16 %v49
  %v102 = vunpack.c.l.b16 %v50
  %v103 = vunpack.c.l.b16 %v51
  %v104 = vpack.c.b16 %v101, %v100
  %v105 = vpack.c.b16 %v103, %v102
  %v124 = vunpack.c.l.b16 %v80
  %v125 = vunpack.c.l.b16 %v81
  %v126 = vunpack.c.l.b16 %v82
  %v127 = vunpack.c.l.b16 %v83
  %v128 = vunpack.c.l.b16 %v84
  %v129 = vunpack.c.l.b16 %v85
  %v130 = vunpack.c.l.b16 %v86
  %v131 = vunpack.c.l.b16 %v87
  %v132 = vunpack.c.l.b16 %v88
  %v133 = vunpack.c.l.b16 %v89
  %v134 = vunpack.c.l.b16 %v90
  %v135 = vunpack.c.l.b16 %v91
  %v136 = vunpack.c.l.b16 %v92
  %v137 = vunpack.c.l.b16 %v93
  %v138 = vunpack.c.l.b16 %v94
  %v139 = vunpack.c.l.b16 %v95
  %v140 = vpack.c.b16 %v125, %v124
  %v141 = vpack.c.b16 %v127, %v126
  %v142 = vpack.c.b16 %v129, %v128
  %v143 = vpack.c.b16 %v131, %v130
  %v144 = vpack.c.b16 %v133, %v132
  %v145 = vpack.c.b16 %v135, %v134
  %v146 = vpack.c.b16 %v137, %v136
  %v147 = vpack.c.b16 %v139, %v138
  %156 = vmatpush.bf16.msra.mxu0 %v147
  %157 = vmatpush.bf16.msra.mxu0 %v146
  %158 = vmatpush.bf16.msra.mxu0 %v145
  %159 = vmatpush.bf16.msra.mxu0 %v144
  %160 = vmatpush.bf16.msra.mxu0 %v143
  %161 = vmatpush.bf16.msra.mxu0 %v142
  %162 = vmatpush.bf16.msra.mxu0 %v141
  %163 = vmatpush.bf16.msra.mxu0 %v140
  %164 = vmatmul.bf16.gmra.mxu0 %v104
  %v165 = vpop.f32.mrf.mxu0
  %v166 = vadd.f32 0.0, %v165
  %v167 = vpop.f32.mrf.mxu0
  %v168 = vadd.f32 0.0, %v167
  %169 = vmatmul.bf16.gmra.mxu0 %v105
  %v170 = vpop.f32.mrf.mxu0
  %v171 = vadd.f32 0.0, %v170
  %v172 = vpop.f32.mrf.mxu0
  %v173 = vadd.f32 0.0, %v172
  %174 = vdwg.mxu0
  %175 = vst [vmem:[#allocation2] sm:$0xff] %v166
  %176 = vst [vmem:[#allocation2 + $0x8] sm:$0xff] %v168
  %177 = vst [vmem:[#allocation2 + $0x10] sm:$0xff] %v171
  %178 = vst [vmem:[#allocation2 + $0x18] sm:$0xff] %v173
  %v179 = vld [vmem:[#allocation2 + $0x1] sm:$0xff]
  %v180 = vld [vmem:[#allocation2 + $0x9] sm:$0xff]
  %v181 = vld [vmem:[#allocation2 + $0x11] sm:$0xff]
  %v182 = vld [vmem:[#allocation2 + $0x19] sm:$0x7f]
  %v183 = vld [vmem:[%s1] sm:$0xf]
  %v184 = vld [vmem:[%s1 + $0x4] sm:$0xf]
  %v185 = vld [vmem:[%s1 + $0x8] sm:$0xf]
  %v186 = vld [vmem:[%s1 + $0xc] sm:$0xf]
  %v187 = vld [vmem:[%s1 + $0x10] sm:$0xf]
  %v188 = vld [vmem:[%s1 + $0x14] sm:$0xf]
  %v189 = vld [vmem:[%s1 + $0x18] sm:$0xf]
  %v190 = vld [vmem:[%s1 + $0x1c] sm:$0xf]
  %v191 = vld [vmem:[%s1 + $0x20] sm:$0xf]
  %v192 = vld [vmem:[%s1 + $0x24] sm:$0xf]
  %v193 = vld [vmem:[%s1 + $0x28] sm:$0xf]
  %v194 = vld [vmem:[%s1 + $0x2c] sm:$0xf]
  %v195 = vld [vmem:[%s1 + $0x30] sm:$0xf]
  %v196 = vld [vmem:[%s1 + $0x34] sm:$0xf]
  %v197 = vld [vmem:[%s1 + $0x38] sm:$0xf]
  %v198 = vld [vmem:[%s1 + $0x3c] sm:$0xf]
  %v203 = vunpack.c.l.b16 %v63
  %v204 = vunpack.c.l.b16 %v64
  %v205 = vunpack.c.l.b16 %v65
  %v206 = vunpack.c.l.b16 %v66
  %v207 = vpack.c.b16 %v204, %v203
  %v208 = vpack.c.b16 %v206, %v205
  %v227 = vunpack.c.l.b16 %v183
  %v228 = vunpack.c.l.b16 %v184
  %v229 = vunpack.c.l.b16 %v185
  %v230 = vunpack.c.l.b16 %v186
  %v231 = vunpack.c.l.b16 %v187
  %v232 = vunpack.c.l.b16 %v188
  %v233 = vunpack.c.l.b16 %v189
  %v234 = vunpack.c.l.b16 %v190
  %v235 = vunpack.c.l.b16 %v191
  %v236 = vunpack.c.l.b16 %v192
  %v237 = vunpack.c.l.b16 %v193
  %v238 = vunpack.c.l.b16 %v194
  %v239 = vunpack.c.l.b16 %v195
  %v240 = vunpack.c.l.b16 %v196
  %v241 = vunpack.c.l.b16 %v197
  %v242 = vunpack.c.l.b16 %v198
  %v243 = vpack.c.b16 %v228, %v227
  %v244 = vpack.c.b16 %v230, %v229
  %v245 = vpack.c.b16 %v232, %v231
  %v246 = vpack.c.b16 %v234, %v233
  %v247 = vpack.c.b16 %v236, %v235
  %v248 = vpack.c.b16 %v238, %v237
  %v249 = vpack.c.b16 %v240, %v239
  %v250 = vpack.c.b16 %v242, %v241
  %259 = vmatpush.bf16.msra.mxu0 %v250
  %260 = vmatpush.bf16.msra.mxu0 %v249
  %261 = vmatpush.bf16.msra.mxu0 %v248
  %262 = vmatpush.bf16.msra.mxu0 %v247
  %263 = vmatpush.bf16.msra.mxu0 %v246
  %264 = vmatpush.bf16.msra.mxu0 %v245
  %265 = vmatpush.bf16.msra.mxu0 %v244
  %266 = vmatpush.bf16.msra.mxu0 %v243
  %267 = vmatmul.bf16.gmra.mxu0 %v207
  %v268 = vpop.f32.mrf.mxu0
  %v269 = vadd.f32 0.0, %v268
  %v270 = vpop.f32.mrf.mxu0
  %v271 = vadd.f32 0.0, %v270
  %272 = vmatmul.bf16.gmra.mxu0 %v208
  %v273 = vpop.f32.mrf.mxu0
  %v274 = vadd.f32 0.0, %v273
  %v275 = vpop.f32.mrf.mxu0
  %v276 = vadd.f32 0.0, %v275
  %277 = vdwg.mxu0
  %v278 = vadd.f32 %v179, %v269
  %v279 = vadd.f32 %v180, %v271
  %v280 = vadd.f32 %v181, %v274
  %v281 = vadd.f32 %v182, %v276
  %282 = vst [vmem:[#allocation2 + $0x1] sm:$0xff] %v278
  %283 = vst [vmem:[#allocation2 + $0x9] sm:$0xff] %v279
  %284 = vst [vmem:[#allocation2 + $0x11] sm:$0xff] %v280
  %285 = vst [vmem:[#allocation2 + $0x19] sm:$0x7f] %v281
  %v286 = vld [vmem:[#allocation2] sm:$0xff]
  %v287 = vld [vmem:[#allocation2 + $0x8] sm:$0xff]
  %v288 = vld [vmem:[#allocation2 + $0x10] sm:$0xff]
  %v289 = vld [vmem:[#allocation2 + $0x18] sm:$0x7f]
  %s290 = scalar_lea.vmem %s1, 128
  %v291 = vld [vmem:[%s290] sm:$0xf]
  %v292 = vld [vmem:[%s290 + $0x4] sm:$0xf]
  %v293 = vld [vmem:[%s290 + $0x8] sm:$0xf]
  %v294 = vld [vmem:[%s290 + $0xc] sm:$0xf]
  %v295 = vld [vmem:[%s290 + $0x10] sm:$0xf]
  %v296 = vld [vmem:[%s290 + $0x14] sm:$0xf]
  %v297 = vld [vmem:[%s290 + $0x18] sm:$0xf]
  %v298 = vld [vmem:[%s290 + $0x1c] sm:$0xf]
  %v299 = vld [vmem:[%s290 + $0x20] sm:$0xf]
  %v300 = vld [vmem:[%s290 + $0x24] sm:$0xf]
  %v301 = vld [vmem:[%s290 + $0x28] sm:$0xf]
  %v302 = vld [vmem:[%s290 + $0x2c] sm:$0xf]
  %v303 = vld [vmem:[%s290 + $0x30] sm:$0xf]
  %v304 = vld [vmem:[%s290 + $0x34] sm:$0xf]
  %v305 = vld [vmem:[%s290 + $0x38] sm:$0xf]
  %v306 = vld [vmem:[%s290 + $0x3c] sm:$0xf]
  %v311 = vunpack.c.l.b16 %v75
  %v312 = vunpack.c.l.b16 %v76
  %v313 = vunpack.c.l.b16 %v77
  %v314 = vunpack.c.l.b16 %v78
  %v315 = vpack.c.b16 %v312, %v311
  %v316 = vpack.c.b16 %v314, %v313
  %vm317 = vsmask.f32 7424
  %v319 = vshrl.u32 %v315, 16
  %v321 = vshll.u32 %v315, 16
  %v323 = vrot.slane %v321, 1
  %v324 = vor.u32 %v319, %v323
  %v326 = vshll.u32 %v316, 16
  %v328 = vrot.slane %v326, 1
  %v329 = vsel %vm317, %v324, %v328
  %v330 = vshrl.u32 %v316, 16
  %v332 = vor.u32 %v330, %v328
  %v351 = vunpack.c.l.b16 %v291
  %v352 = vunpack.c.l.b16 %v292
  %v353 = vunpack.c.l.b16 %v293
  %v354 = vunpack.c.l.b16 %v294
  %v355 = vunpack.c.l.b16 %v295
  %v356 = vunpack.c.l.b16 %v296
  %v357 = vunpack.c.l.b16 %v297
  %v358 = vunpack.c.l.b16 %v298
  %v359 = vunpack.c.l.b16 %v299
  %v360 = vunpack.c.l.b16 %v300
  %v361 = vunpack.c.l.b16 %v301
  %v362 = vunpack.c.l.b16 %v302
  %v363 = vunpack.c.l.b16 %v303
  %v364 = vunpack.c.l.b16 %v304
  %v365 = vunpack.c.l.b16 %v305
  %v366 = vunpack.c.l.b16 %v306
  %v367 = vpack.c.b16 %v352, %v351
  %v368 = vpack.c.b16 %v354, %v353
  %v369 = vpack.c.b16 %v356, %v355
  %v370 = vpack.c.b16 %v358, %v357
  %v371 = vpack.c.b16 %v360, %v359
  %v372 = vpack.c.b16 %v362, %v361
  %v373 = vpack.c.b16 %v364, %v363
  %v374 = vpack.c.b16 %v366, %v365
  %383 = vmatpush.bf16.msra.mxu0 %v374
  %384 = vmatpush.bf16.msra.mxu0 %v373
  %385 = vmatpush.bf16.msra.mxu0 %v372
  %386 = vmatpush.bf16.msra.mxu0 %v371
  %387 = vmatpush.bf16.msra.mxu0 %v370
  %388 = vmatpush.bf16.msra.mxu0 %v369
  %389 = vmatpush.bf16.msra.mxu0 %v368
  %390 = vmatpush.bf16.msra.mxu0 %v367
  %391 = vmatmul.bf16.gmra.mxu0 %v329
  %v392 = vpop.f32.mrf.mxu0
  %v393 = vadd.f32 0.0, %v392
  %v394 = vpop.f32.mrf.mxu0
  %v395 = vadd.f32 0.0, %v394
  %396 = vmatmul.bf16.gmra.mxu0 %v332
  %v397 = vpop.f32.mrf.mxu0
  %v398 = vadd.f32 0.0, %v397
  %v399 = vpop.f32.mrf.mxu0
  %v400 = vadd.f32 0.0, %v399
  %401 = vdwg.mxu0
  %v402 = vadd.f32 %v286, %v393
  %v403 = vadd.f32 %v287, %v395
  %v404 = vadd.f32 %v288, %v398
  %v405 = vadd.f32 %v289, %v400
  %406 = vst [vmem:[#allocation2] sm:$0xff] %v402
  %407 = vst [vmem:[#allocation2 + $0x8] sm:$0xff] %v403
  %408 = vst [vmem:[#allocation2 + $0x10] sm:$0xff] %v404
  %409 = vst [vmem:[#allocation2 + $0x18] sm:$0x7f] %v405
  %v410 = vld [vmem:[#allocation2] sm:$0xff]
  %v411 = vld [vmem:[#allocation2 + $0x8] sm:$0xff]
  %v412 = vld [vmem:[#allocation2 + $0x10] sm:$0xff]
  %v413 = vld [vmem:[#allocation2 + $0x18] sm:$0xff]
  %v414 = vadd.f32 %v410, %v411
  %v415 = vadd.f32 %v414, %v412
  %v416 = vadd.f32 %v415, %v413
  %v417 = vrot.slane %v416, 4
  %v418 = vadd.f32 %v416, %v417
  %v419 = vrot.slane %v418, 2
  %v420 = vadd.f32 %v418, %v419
  %v421 = vrot.slane %v420, 1
  %v422 = vadd.f32 %v420, %v421
  %423 = vst [vmem:[%s4] sm:$0x1] %v422
  %v424 = vmul.f32 %v410, %v410
  %v425 = vmul.f32 %v411, %v411
  %v426 = vmul.f32 %v412, %v412
  %v427 = vmul.f32 %v413, %v413
  %v428 = vadd.f32 %v424, %v425
  %v429 = vadd.f32 %v428, %v426
  %v430 = vadd.f32 %v429, %v427
  %v431 = vrot.slane %v430, 4
  %v432 = vadd.f32 %v430, %v431
  %v433 = vrot.slane %v432, 2
  %v434 = vadd.f32 %v432, %v433
  %v435 = vrot.slane %v434, 1
  %v436 = vadd.f32 %v434, %v435
  %437 = vst [vmem:[%s5] sm:$0x1] %v436
  // Predicated region
  $region18: #{double_convolution.4} parent=0 // pred_check
    _
  $region19: #{double_convolution.4} parent=0 // pred_check_branch
    %439 = sbr.rel (0) target = $region21
  $region20: #{double_convolution.4} parent=0 // pred_region
    _
  $region21: #{double_convolution.4} parent=0 // pred_fallthru
    _
  // Predicated region
  $region22: #{double_convolution.4} parent=0 // pred_check
    _
  $region23: #{double_convolution.4} parent=0 // pred_check_branch
    %441 = sbr.rel (0) target = $region25
  $region24: #{double_convolution.4} parent=0 // pred_region
    _
  $region25: #{double_convolution.4} parent=0 // pred_fallthru
    _
  // Predicated region
  $region26: #{double_convolution.4} parent=0 // pred_check
    _
  $region27: #{double_convolution.4} parent=0 // pred_check_branch
    %443 = sbr.rel (0) target = $region29
  $region28: #{double_convolution.4} parent=0 // pred_region
    _
  $region29: #{double_convolution.4} parent=0 // pred_fallthru
    _
  // Predicated region
  $region30: #{double_convolution.4} parent=0 // pred_check
    _
  $region31: #{double_convolution.4} parent=0 // pred_check_branch
    %445 = sbr.rel (0) target = $region33
  $region32: #{double_convolution.4} parent=0 // pred_region
    _
  $region33: #{double_convolution.4} parent=0 // pred_fallthru
    _

// kernel: double_convolution.5
$region0: #{double_convolution.5}
  #allocation0 [shape = 'u32[]', space=smem, size = 0x4, offset = 0x4, fixed_abs, tag = 'smem constant byte address 0x4 - core index']
  #allocation1 [shape = 'u32[72,128]{1,0:T(1,128)}', space=vmem, size = 0x9000, scoped, tag = 'internal scratch']
  #allocation2 [shape = 'f32[32,128]{1,0:T(8,128)}', space=vmem, size = 0x4000, scoped, tag = 'scratch operand']
  %s0 = inlined_call_operand.vmem [shape: bf16[2,16,128], index: 0, kind: input, shape index: {}]
  %s1 = inlined_call_operand.vmem [shape: bf16[3,128,128], index: 1, kind: input, shape index: {}]
  %s2 = inlined_call_operand.vmem [shape: f32[1,128], index: 2, kind: input, shape index: {}]
  %s3 = inlined_call_operand.vmem [shape: f32[1,128], index: 3, kind: input, shape index: {}]
  %s4 = inlined_call_operand.vmem [shape: f32[1,128], index: 4, kind: input, shape index: {}]
  %s5 = inlined_call_operand.vmem [shape: f32[1,128], index: 5, kind: input, shape index: {}]
  %s6 = inlined_call_operand.vmem [shape: f32[2,16,128], index: 6, kind: output, shape index: {}]
  %s7 = sld [smem:[#allocation0]]
  $region34: #{double_convolution.5} parent=0
    _
  %s9 = ssub.s32 1, %s7
  %s10 = scalar_select 0, %s9, %s7
  // Predicated region
  $region2: #{double_convolution.5} parent=0 // pred_check
    _
  $region3: #{double_convolution.5} parent=0 // pred_check_branch
    %12 = sbr.rel (0) target = $region5
  $region4: #{double_convolution.5} parent=0 // pred_region
    _
  $region5: #{double_convolution.5} parent=0 // pred_fallthru
    _
  // Predicated region
  $region6: #{double_convolution.5} parent=0 // pred_check
    _
  $region7: #{double_convolution.5} parent=0 // pred_check_branch
    %14 = sbr.rel (0) target = $region9
  $region8: #{double_convolution.5} parent=0 // pred_region
    _
  $region9: #{double_convolution.5} parent=0 // pred_fallthru
    _
  // Predicated region
  $region10: #{double_convolution.5} parent=0 // pred_check
    _
  $region11: #{double_convolution.5} parent=0 // pred_check_branch
    %16 = sbr.rel (0) target = $region13
  $region12: #{double_convolution.5} parent=0 // pred_region
    _
  $region13: #{double_convolution.5} parent=0 // pred_fallthru
    _
  // Predicated region
  $region14: #{double_convolution.5} parent=0 // pred_check
    _
  $region15: #{double_convolution.5} parent=0 // pred_check_branch
    %18 = sbr.rel (0) target = $region17
  $region16: #{double_convolution.5} parent=0 // pred_region
    _
  $region17: #{double_convolution.5} parent=0 // pred_fallthru
    _
  // Predicated region
  $region18: #{double_convolution.5} parent=0 // pred_check
    _
  $region19: #{double_convolution.5} parent=0 // pred_check_branch
    %20 = sbr.rel (0) target = $region21
  $region20: #{double_convolution.5} parent=0 // pred_region
    _
  $region21: #{double_convolution.5} parent=0 // pred_fallthru
    _
  // Predicated region
  $region22: #{double_convolution.5} parent=0 // pred_check
    _
  $region23: #{double_convolution.5} parent=0 // pred_check_branch
    %22 = sbr.rel (0) target = $region25
  $region24: #{double_convolution.5} parent=0 // pred_region
    _
  $region25: #{double_convolution.5} parent=0 // pred_fallthru
    _
  %v24 = vld [vmem:[%s0] sm:$0xf]
  %v25 = vld [vmem:[%s0 + $0x4] sm:$0xf]
  %v26 = vld [vmem:[%s0 + $0x8] sm:$0xf]
  %v27 = vld [vmem:[%s0 + $0xc] sm:$0xf]
  %v28 = vunpack.c.l.bf16 %v24
  %v29 = vunpack.c.l.bf16 %v25
  %v30 = vunpack.c.l.bf16 %v26
  %v31 = vunpack.c.l.bf16 %v27
  %v32 = vld [vmem:[%s2] sm:$0x1]
  %v34 = vperm.slane %v32, 0
  %v36 = vmul.f32 %v28, %v34
  %v37 = vmul.f32 %v29, %v34
  %v38 = vmul.f32 %v30, %v34
  %v39 = vmul.f32 %v31, %v34
  %v40 = vld [vmem:[%s3] sm:$0x1]
  %v42 = vperm.slane %v40, 0
  %v44 = vadd.f32 %v36, %v42
  %v45 = vadd.f32 %v37, %v42
  %v46 = vadd.f32 %v38, %v42
  %v47 = vadd.f32 %v39, %v42
  %v48 = vmax.f32 %v44, 0.0
  %v49 = vmax.f32 %v45, 0.0
  %v50 = vmax.f32 %v46, 0.0
  %v51 = vmax.f32 %v47, 0.0
  %v52 = vpack.c.bf16 %v48, %v48
  %v53 = vpack.c.bf16 %v49, %v49
  %v54 = vpack.c.bf16 %v50, %v50
  %v55 = vpack.c.bf16 %v51, %v51
  %v56 = vlaneseq
  %v57 = vshrl.u32 %v56, 7
  %v58 = vadd.s32 %v57, 8
  %vm59 = vcmp.eq.s32.totalorder %v57, 15
  %vm60 = vcmp.eq.s32.totalorder %v58, 15
  %v61 = vsel %vm59, 1, 0
  %v62 = vsel %vm60, 1, 0
  %vm63 = vcmp.eq.s32.totalorder %v61, 1
  %vm64 = vcmp.eq.s32.totalorder %v62, 1
  %vm65 = vmpackc.low %vm63, %vm63
  %vm66 = vmpackc.low %vm64, %vm64
  %v67 = vsel %vm65, 0, %v52
  %v68 = vsel %vm66, 0, %v53
  %v69 = vsel %vm65, 0, %v54
  %v70 = vsel %vm66, 0, %v55
  %vm71 = vcmp.eq.s32.totalorder %v57, 0
  %vm72 = vcmp.eq.s32.totalorder %v58, 0
  %v73 = vsel %vm71, 1, 0
  %v74 = vsel %vm72, 1, 0
  %vm75 = vcmp.eq.s32.totalorder %v73, 1
  %vm76 = vcmp.eq.s32.totalorder %v74, 1
  %vm77 = vmpackc.low %vm75, %vm75
  %vm78 = vmpackc.low %vm76, %vm76
  %v79 = vsel %vm77, 0, %v52
  %v80 = vsel %vm78, 0, %v53
  %v81 = vsel %vm77, 0, %v54
  %v82 = vsel %vm78, 0, %v55
  %s83 = scalar_lea.vmem %s1, 64
  %v84 = vld [vmem:[%s83] sm:$0xf]
  %v85 = vld [vmem:[%s83 + $0x4] sm:$0xf]
  %v86 = vld [vmem:[%s83 + $0x8] sm:$0xf]
  %v87 = vld [vmem:[%s83 + $0xc] sm:$0xf]
  %v88 = vld [vmem:[%s83 + $0x10] sm:$0xf]
  %v89 = vld [vmem:[%s83 + $0x14] sm:$0xf]
  %v90 = vld [vmem:[%s83 + $0x18] sm:$0xf]
  %v91 = vld [vmem:[%s83 + $0x1c] sm:$0xf]
  %v92 = vld [vmem:[%s83 + $0x20] sm:$0xf]
  %v93 = vld [vmem:[%s83 + $0x24] sm:$0xf]
  %v94 = vld [vmem:[%s83 + $0x28] sm:$0xf]
  %v95 = vld [vmem:[%s83 + $0x2c] sm:$0xf]
  %v96 = vld [vmem:[%s83 + $0x30] sm:$0xf]
  %v97 = vld [vmem:[%s83 + $0x34] sm:$0xf]
  %v98 = vld [vmem:[%s83 + $0x38] sm:$0xf]
  %v99 = vld [vmem:[%s83 + $0x3c] sm:$0xf]
  %v104 = vunpack.c.l.b16 %v52
  %v105 = vunpack.c.l.b16 %v53
  %v106 = vunpack.c.l.b16 %v54
  %v107 = vunpack.c.l.b16 %v55
  %v108 = vpack.c.b16 %v105, %v104
  %v109 = vpack.c.b16 %v107, %v106
  %v128 = vunpack.c.l.b16 %v84
  %v129 = vunpack.c.l.b16 %v85
  %v130 = vunpack.c.l.b16 %v86
  %v131 = vunpack.c.l.b16 %v87
  %v132 = vunpack.c.l.b16 %v88
  %v133 = vunpack.c.l.b16 %v89
  %v134 = vunpack.c.l.b16 %v90
  %v135 = vunpack.c.l.b16 %v91
  %v136 = vunpack.c.l.b16 %v92
  %v137 = vunpack.c.l.b16 %v93
  %v138 = vunpack.c.l.b16 %v94
  %v139 = vunpack.c.l.b16 %v95
  %v140 = vunpack.c.l.b16 %v96
  %v141 = vunpack.c.l.b16 %v97
  %v142 = vunpack.c.l.b16 %v98
  %v143 = vunpack.c.l.b16 %v99
  %v144 = vpack.c.b16 %v129, %v128
  %v145 = vpack.c.b16 %v131, %v130
  %v146 = vpack.c.b16 %v133, %v132
  %v147 = vpack.c.b16 %v135, %v134
  %v148 = vpack.c.b16 %v137, %v136
  %v149 = vpack.c.b16 %v139, %v138
  %v150 = vpack.c.b16 %v141, %v140
  %v151 = vpack.c.b16 %v143, %v142
  %160 = vmatpush.bf16.msra.mxu0 %v151
  %161 = vmatpush.bf16.msra.mxu0 %v150
  %162 = vmatpush.bf16.msra.mxu0 %v149
  %163 = vmatpush.bf16.msra.mxu0 %v148
  %164 = vmatpush.bf16.msra.mxu0 %v147
  %165 = vmatpush.bf16.msra.mxu0 %v146
  %166 = vmatpush.bf16.msra.mxu0 %v145
  %167 = vmatpush.bf16.msra.mxu0 %v144
  %168 = vmatmul.bf16.gmra.mxu0 %v108
  %v169 = vpop.f32.mrf.mxu0
  %v170 = vadd.f32 0.0, %v169
  %v171 = vpop.f32.mrf.mxu0
  %v172 = vadd.f32 0.0, %v171
  %173 = vmatmul.bf16.gmra.mxu0 %v109
  %v174 = vpop.f32.mrf.mxu0
  %v175 = vadd.f32 0.0, %v174
  %v176 = vpop.f32.mrf.mxu0
  %v177 = vadd.f32 0.0, %v176
  %178 = vdwg.mxu0
  %179 = vst [vmem:[#allocation2] sm:$0xff] %v170
  %180 = vst [vmem:[#allocation2 + $0x8] sm:$0xff] %v172
  %181 = vst [vmem:[#allocation2 + $0x10] sm:$0xff] %v175
  %182 = vst [vmem:[#allocation2 + $0x18] sm:$0xff] %v177
  %v183 = vld [vmem:[#allocation2 + $0x1] sm:$0xff]
  %v184 = vld [vmem:[#allocation2 + $0x9] sm:$0xff]
  %v185 = vld [vmem:[#allocation2 + $0x11] sm:$0xff]
  %v186 = vld [vmem:[#allocation2 + $0x19] sm:$0x7f]
  %v187 = vld [vmem:[%s1] sm:$0xf]
  %v188 = vld [vmem:[%s1 + $0x4] sm:$0xf]
  %v189 = vld [vmem:[%s1 + $0x8] sm:$0xf]
  %v190 = vld [vmem:[%s1 + $0xc] sm:$0xf]
  %v191 = vld [vmem:[%s1 + $0x10] sm:$0xf]
  %v192 = vld [vmem:[%s1 + $0x14] sm:$0xf]
  %v193 = vld [vmem:[%s1 + $0x18] sm:$0xf]
  %v194 = vld [vmem:[%s1 + $0x1c] sm:$0xf]
  %v195 = vld [vmem:[%s1 + $0x20] sm:$0xf]
  %v196 = vld [vmem:[%s1 + $0x24] sm:$0xf]
  %v197 = vld [vmem:[%s1 + $0x28] sm:$0xf]
  %v198 = vld [vmem:[%s1 + $0x2c] sm:$0xf]
  %v199 = vld [vmem:[%s1 + $0x30] sm:$0xf]
  %v200 = vld [vmem:[%s1 + $0x34] sm:$0xf]
  %v201 = vld [vmem:[%s1 + $0x38] sm:$0xf]
  %v202 = vld [vmem:[%s1 + $0x3c] sm:$0xf]
  %v207 = vunpack.c.l.b16 %v67
  %v208 = vunpack.c.l.b16 %v68
  %v209 = vunpack.c.l.b16 %v69
  %v210 = vunpack.c.l.b16 %v70
  %v211 = vpack.c.b16 %v208, %v207
  %v212 = vpack.c.b16 %v210, %v209
  %v231 = vunpack.c.l.b16 %v187
  %v232 = vunpack.c.l.b16 %v188
  %v233 = vunpack.c.l.b16 %v189
  %v234 = vunpack.c.l.b16 %v190
  %v235 = vunpack.c.l.b16 %v191
  %v236 = vunpack.c.l.b16 %v192
  %v237 = vunpack.c.l.b16 %v193
  %v238 = vunpack.c.l.b16 %v194
  %v239 = vunpack.c.l.b16 %v195
  %v240 = vunpack.c.l.b16 %v196
  %v241 = vunpack.c.l.b16 %v197
  %v242 = vunpack.c.l.b16 %v198
  %v243 = vunpack.c.l.b16 %v199
  %v244 = vunpack.c.l.b16 %v200
  %v245 = vunpack.c.l.b16 %v201
  %v246 = vunpack.c.l.b16 %v202
  %v247 = vpack.c.b16 %v232, %v231
  %v248 = vpack.c.b16 %v234, %v233
  %v249 = vpack.c.b16 %v236, %v235
  %v250 = vpack.c.b16 %v238, %v237
  %v251 = vpack.c.b16 %v240, %v239
  %v252 = vpack.c.b16 %v242, %v241
  %v253 = vpack.c.b16 %v244, %v243
  %v254 = vpack.c.b16 %v246, %v245
  %263 = vmatpush.bf16.msra.mxu0 %v254
  %264 = vmatpush.bf16.msra.mxu0 %v253
  %265 = vmatpush.bf16.msra.mxu0 %v252
  %266 = vmatpush.bf16.msra.mxu0 %v251
  %267 = vmatpush.bf16.msra.mxu0 %v250
  %268 = vmatpush.bf16.msra.mxu0 %v249
  %269 = vmatpush.bf16.msra.mxu0 %v248
  %270 = vmatpush.bf16.msra.mxu0 %v247
  %271 = vmatmul.bf16.gmra.mxu0 %v211
  %v272 = vpop.f32.mrf.mxu0
  %v273 = vadd.f32 0.0, %v272
  %v274 = vpop.f32.mrf.mxu0
  %v275 = vadd.f32 0.0, %v274
  %276 = vmatmul.bf16.gmra.mxu0 %v212
  %v277 = vpop.f32.mrf.mxu0
  %v278 = vadd.f32 0.0, %v277
  %v279 = vpop.f32.mrf.mxu0
  %v280 = vadd.f32 0.0, %v279
  %281 = vdwg.mxu0
  %v282 = vadd.f32 %v183, %v273
  %v283 = vadd.f32 %v184, %v275
  %v284 = vadd.f32 %v185, %v278
  %v285 = vadd.f32 %v186, %v280
  %286 = vst [vmem:[#allocation2 + $0x1] sm:$0xff] %v282
  %287 = vst [vmem:[#allocation2 + $0x9] sm:$0xff] %v283
  %288 = vst [vmem:[#allocation2 + $0x11] sm:$0xff] %v284
  %289 = vst [vmem:[#allocation2 + $0x19] sm:$0x7f] %v285
  %v290 = vld [vmem:[#allocation2] sm:$0xff]
  %v291 = vld [vmem:[#allocation2 + $0x8] sm:$0xff]
  %v292 = vld [vmem:[#allocation2 + $0x10] sm:$0xff]
  %v293 = vld [vmem:[#allocation2 + $0x18] sm:$0x7f]
  %s294 = scalar_lea.vmem %s1, 128
  %v295 = vld [vmem:[%s294] sm:$0xf]
  %v296 = vld [vmem:[%s294 + $0x4] sm:$0xf]
  %v297 = vld [vmem:[%s294 + $0x8] sm:$0xf]
  %v298 = vld [vmem:[%s294 + $0xc] sm:$0xf]
  %v299 = vld [vmem:[%s294 + $0x10] sm:$0xf]
  %v300 = vld [vmem:[%s294 + $0x14] sm:$0xf]
  %v301 = vld [vmem:[%s294 + $0x18] sm:$0xf]
  %v302 = vld [vmem:[%s294 + $0x1c] sm:$0xf]
  %v303 = vld [vmem:[%s294 + $0x20] sm:$0xf]
  %v304 = vld [vmem:[%s294 + $0x24] sm:$0xf]
  %v305 = vld [vmem:[%s294 + $0x28] sm:$0xf]
  %v306 = vld [vmem:[%s294 + $0x2c] sm:$0xf]
  %v307 = vld [vmem:[%s294 + $0x30] sm:$0xf]
  %v308 = vld [vmem:[%s294 + $0x34] sm:$0xf]
  %v309 = vld [vmem:[%s294 + $0x38] sm:$0xf]
  %v310 = vld [vmem:[%s294 + $0x3c] sm:$0xf]
  %v315 = vunpack.c.l.b16 %v79
  %v316 = vunpack.c.l.b16 %v80
  %v317 = vunpack.c.l.b16 %v81
  %v318 = vunpack.c.l.b16 %v82
  %v319 = vpack.c.b16 %v316, %v315
  %v320 = vpack.c.b16 %v318, %v317
  %vm321 = vsmask.f32 7424
  %v323 = vshrl.u32 %v319, 16
  %v325 = vshll.u32 %v319, 16
  %v327 = vrot.slane %v325, 1
  %v328 = vor.u32 %v323, %v327
  %v330 = vshll.u32 %v320, 16
  %v332 = vrot.slane %v330, 1
  %v333 = vsel %vm321, %v328, %v332
  %v334 = vshrl.u32 %v320, 16
  %v336 = vor.u32 %v334, %v332
  %v355 = vunpack.c.l.b16 %v295
  %v356 = vunpack.c.l.b16 %v296
  %v357 = vunpack.c.l.b16 %v297
  %v358 = vunpack.c.l.b16 %v298
  %v359 = vunpack.c.l.b16 %v299
  %v360 = vunpack.c.l.b16 %v300
  %v361 = vunpack.c.l.b16 %v301
  %v362 = vunpack.c.l.b16 %v302
  %v363 = vunpack.c.l.b16 %v303
  %v364 = vunpack.c.l.b16 %v304
  %v365 = vunpack.c.l.b16 %v305
  %v366 = vunpack.c.l.b16 %v306
  %v367 = vunpack.c.l.b16 %v307
  %v368 = vunpack.c.l.b16 %v308
  %v369 = vunpack.c.l.b16 %v309
  %v370 = vunpack.c.l.b16 %v310
  %v371 = vpack.c.b16 %v356, %v355
  %v372 = vpack.c.b16 %v358, %v357
  %v373 = vpack.c.b16 %v360, %v359
  %v374 = vpack.c.b16 %v362, %v361
  %v375 = vpack.c.b16 %v364, %v363
  %v376 = vpack.c.b16 %v366, %v365
  %v377 = vpack.c.b16 %v368, %v367
  %v378 = vpack.c.b16 %v370, %v369
  %387 = vmatpush.bf16.msra.mxu0 %v378
  %388 = vmatpush.bf16.msra.mxu0 %v377
  %389 = vmatpush.bf16.msra.mxu0 %v376
  %390 = vmatpush.bf16.msra.mxu0 %v375
  %391 = vmatpush.bf16.msra.mxu0 %v374
  %392 = vmatpush.bf16.msra.mxu0 %v373
  %393 = vmatpush.bf16.msra.mxu0 %v372
  %394 = vmatpush.bf16.msra.mxu0 %v371
  %395 = vmatmul.bf16.gmra.mxu0 %v333
  %v396 = vpop.f32.mrf.mxu0
  %v397 = vadd.f32 0.0, %v396
  %v398 = vpop.f32.mrf.mxu0
  %v399 = vadd.f32 0.0, %v398
  %400 = vmatmul.bf16.gmra.mxu0 %v336
  %v401 = vpop.f32.mrf.mxu0
  %v402 = vadd.f32 0.0, %v401
  %v403 = vpop.f32.mrf.mxu0
  %v404 = vadd.f32 0.0, %v403
  %405 = vdwg.mxu0
  %v406 = vadd.f32 %v290, %v397
  %v407 = vadd.f32 %v291, %v399
  %v408 = vadd.f32 %v292, %v402
  %v409 = vadd.f32 %v293, %v404
  %410 = vst [vmem:[#allocation2] sm:$0xff] %v406
  %411 = vst [vmem:[#allocation2 + $0x8] sm:$0xff] %v407
  %412 = vst [vmem:[#allocation2 + $0x10] sm:$0xff] %v408
  %413 = vst [vmem:[#allocation2 + $0x18] sm:$0x7f] %v409
  %v414 = vld [vmem:[#allocation2] sm:$0xff]
  %v415 = vld [vmem:[#allocation2 + $0x8] sm:$0xff]
  %v416 = vld [vmem:[#allocation2 + $0x10] sm:$0xff]
  %v417 = vld [vmem:[#allocation2 + $0x18] sm:$0xff]
  %v418 = vld [vmem:[%s4] sm:$0x1]
  %v420 = vperm.slane %v418, 0
  %v422 = vmul.f32 %v414, %v420
  %v423 = vmul.f32 %v415, %v420
  %v424 = vmul.f32 %v416, %v420
  %v425 = vmul.f32 %v417, %v420
  %v426 = vld [vmem:[%s5] sm:$0x1]
  %v428 = vperm.slane %v426, 0
  %v430 = vadd.f32 %v422, %v428
  %v431 = vadd.f32 %v423, %v428
  %v432 = vadd.f32 %v424, %v428
  %v433 = vadd.f32 %v425, %v428
  %v434 = vmax.f32 %v430, 0.0
  %v435 = vmax.f32 %v431, 0.0
  %v436 = vmax.f32 %v432, 0.0
  %v437 = vmax.f32 %v433, 0.0
  %438 = vst [vmem:[%s6] sm:$0xff] %v434
  %439 = vst [vmem:[%s6 + $0x8] sm:$0xff] %v435
  %440 = vst [vmem:[%s6 + $0x10] sm:$0xff] %v436
  %441 = vst [vmem:[%s6 + $0x18] sm:$0xff] %v437
  // Predicated region
  $region26: #{double_convolution.5} parent=0 // pred_check
    _
  $region27: #{double_convolution.5} parent=0 // pred_check_branch
    %443 = sbr.rel (0) target = $region29
  $region28: #{double_convolution.5} parent=0 // pred_region
    _
  $region29: #{double_convolution.5} parent=0 // pred_fallthru
    _
  // Predicated region
  $region30: #{double_convolution.5} parent=0 // pred_check
    _
  $region31: #{double_convolution.5} parent=0 // pred_check_branch
    %445 = sbr.rel (0) target = $region33
  $region32: #{double_convolution.5} parent=0 // pred_region
    _
  $region33: #{double_convolution.5} parent=0 // pred_fallthru
    _

</llo_original>
